<compile_context>
chip_gen: v7x
topology: tpu7x:2x2x1
jax: 0.10.0
libtpu: 0.0.40
codegen_flags: <defaults>
</compile_context>

<pallas_src>
import math
import jax
import jax.numpy as jnp
from jax import lax
from jax.experimental import pallas as pl
from jax.experimental.pallas import tpu as pltpu


def _make_attn_kernel(scale, heads, head_dim):
    def attn_kernel(q_ref, k_ref, v_ref, wq_ref, wk_ref, wv_ref,
                    wfc_ref, bfc_ref, o_ref, acc_ref):
        q = q_ref[0]     # (Lq, E)
        k = k_ref[0]     # (Lk, E)
        v = v_ref[0]     # (Lv, E)

        # Shared per-head projection applied to every head at once via the
        # block-diagonal (E, E) weights (already transposed in the wrapper).
        # Fold the 1/sqrt(embed_size) softmax scale into the queries.
        qp = jnp.dot(q, wq_ref[...], preferred_element_type=jnp.float32) * scale
        kp = jnp.dot(k, wk_ref[...], preferred_element_type=jnp.float32)
        vp = jnp.dot(v, wv_ref[...], preferred_element_type=jnp.float32)

        # Per-head attention; `heads` is a small static int -> unrolled at trace time.
        for h in range(heads):
            sl = slice(h * head_dim, (h + 1) * head_dim)   # static column slice
            qh = qp[:, sl]            # (Lq, d)
            kh = kp[:, sl]            # (Lk, d)
            vh = vp[:, sl]            # (Lv, d)

            # energy = q_h @ k_h^T without materializing a transpose:
            # contract the last dims of both operands.
            energy = lax.dot_general(
                qh, kh, dimension_numbers=(((1,), (1,)), ((), ())),
                preferred_element_type=jnp.float32)          # (Lq, Lk)

            # Numerically stable softmax over keys (f32 on the VPU/EUP).
            m = jnp.max(energy, axis=-1, keepdims=True)
            p = jnp.exp(energy - m)
            l = jnp.sum(p, axis=-1, keepdims=True)
            # approx=True would push the divide fully onto the EUP slot; exact
            # keeps the demo within 1e-4 of the f32 reference.
            attn = p * pl.reciprocal(l, approx=False)

            # (Lq, d) head output into its column slice of the concat buffer.
            acc_ref[:, sl] = jnp.dot(attn, vh, preferred_element_type=jnp.float32)

        # fc_out: ONE (Lq, E) x (E, E) matmul (K = E) + bias, single store.
        result = jnp.dot(acc_ref[...], wfc_ref[...],
                         preferred_element_type=jnp.float32) + bfc_ref[...]
        o_ref[0] = result.astype(o_ref.dtype)

    return attn_kernel


def self_attention_pallas(values, keys, query, params, embed_size, heads):
    """values/keys/query: (N, L, embed_size) float32. Returns (N, Lq, embed_size)."""
    N, Lv, E = values.shape
    Lk = keys.shape[1]
    Lq = query.shape[1]
    d = embed_size // heads
    assert E == embed_size and d * heads == embed_size

    # Block-diagonal (E, E) weights: applying the shared (d, d) nn.Linear to
    # every head's column slice becomes one x @ W_bd matmul with K = E.
    # Weights are pre-transposed here so the kernel never takes .T.
    eye_h = jnp.eye(heads, dtype=jnp.float32)
    wq_bd = jnp.kron(eye_h, params["wq"].T)     # (E, E)
    wk_bd = jnp.kron(eye_h, params["wk"].T)     # (E, E)
    wv_bd = jnp.kron(eye_h, params["wv"].T)     # (E, E)
    wfc_t = params["wfc"].T                     # (E, E)
    bfc_2d = params["bfc"].reshape(1, E)

    scale = 1.0 / math.sqrt(embed_size)
    kernel = _make_attn_kernel(scale, heads, d)

    out = pl.pallas_call(
        kernel,
        out_shape=jax.ShapeDtypeStruct((N, Lq, E), jnp.float32),
        grid_spec=pltpu.PrefetchScalarGridSpec(
            num_scalar_prefetch=0,
            grid=(N,),
            in_specs=[
                pl.BlockSpec((1, Lq, E), lambda n: (n, 0, 0)),   # query (natural layout)
                pl.BlockSpec((1, Lk, E), lambda n: (n, 0, 0)),   # keys
                pl.BlockSpec((1, Lv, E), lambda n: (n, 0, 0)),   # values
                pl.BlockSpec((E, E), lambda n: (0, 0)),          # Wq block-diag (pre-T), VMEM-resident
                pl.BlockSpec((E, E), lambda n: (0, 0)),          # Wk block-diag (pre-T)
                pl.BlockSpec((E, E), lambda n: (0, 0)),          # Wv block-diag (pre-T)
                pl.BlockSpec((E, E), lambda n: (0, 0)),          # Wfc^T (full, constant index)
                pl.BlockSpec((1, E), lambda n: (0, 0)),          # bias
            ],
            out_specs=pl.BlockSpec((1, Lq, E), lambda n: (n, 0, 0)),
            scratch_shapes=[pltpu.VMEM((Lq, E), jnp.float32)],   # concat-of-heads buffer
        ),
        compiler_params=pltpu.CompilerParams(
            dimension_semantics=("parallel",)),
    )(query, keys, values, wq_bd, wk_bd, wv_bd, wfc_t, bfc_2d)
    return out


def self_attention_ref(values, keys, query, params, embed_size, heads):
    """Pure-JAX reference mirroring the PyTorch forward (mask=None)."""
    N = query.shape[0]
    Lv, Lk, Lq = values.shape[1], keys.shape[1], query.shape[1]
    d = embed_size // heads
    v = values.reshape(N, Lv, heads, d) @ params["wv"].T
    k = keys.reshape(N, Lk, heads, d) @ params["wk"].T
    q = query.reshape(N, Lq, heads, d) @ params["wq"].T
    energy = jnp.einsum("nqhd,nkhd->nhqk", q, k)
    attn = jax.nn.softmax(energy / math.sqrt(embed_size), axis=3)
    out = jnp.einsum("nhql,nlhd->nqhd", attn, v).reshape(N, Lq, embed_size)
    return out @ params["wfc"].T + params["bfc"]


if __name__ == "__main__":
    # Small shapes consistent with the module.
    N, seq, embed_size, heads = 2, 8, 32, 4
    d = embed_size // heads

    key = jax.random.PRNGKey(0)
    k1, k2, k3, k4, k5, k6, k7, k8 = jax.random.split(key, 8)

    values = jax.random.normal(k1, (N, seq, embed_size), jnp.float32)
    keys_in = jax.random.normal(k2, (N, seq, embed_size), jnp.float32)
    query = jax.random.normal(k3, (N, seq, embed_size), jnp.float32)

    params = {
        "wq": jax.random.normal(k4, (d, d), jnp.float32) * 0.3,
        "wk": jax.random.normal(k5, (d, d), jnp.float32) * 0.3,
        "wv": jax.random.normal(k6, (d, d), jnp.float32) * 0.3,
        "wfc": jax.random.normal(k7, (embed_size, embed_size), jnp.float32) * 0.1,
        "bfc": jax.random.normal(k8, (embed_size,), jnp.float32) * 0.1,
    }

    out = self_attention_pallas(values, keys_in, query, params, embed_size, heads)
    out = jax.block_until_ready(out)

    ref = self_attention_ref(values, keys_in, query, params, embed_size, heads)
    assert out.shape == (N, seq, embed_size)
    assert jnp.allclose(out, ref, atol=1e-4, rtol=1e-4), "mismatch vs reference"

    print("KERNEL_OK")
</pallas_src>

<mosaic_0001>
module attributes {stable_mosaic.version = 11 : i64} {
  func.func @attn_kernel(%arg0: i32, %arg1: memref<1x8x32xf32, #tpu.memory_space<vmem>>, %arg2: memref<1x8x32xf32, #tpu.memory_space<vmem>>, %arg3: memref<1x8x32xf32, #tpu.memory_space<vmem>>, %arg4: memref<32x32xf32, #tpu.memory_space<vmem>>, %arg5: memref<32x32xf32, #tpu.memory_space<vmem>>, %arg6: memref<32x32xf32, #tpu.memory_space<vmem>>, %arg7: memref<32x32xf32, #tpu.memory_space<vmem>>, %arg8: memref<1x32xf32, #tpu.memory_space<vmem>>, %arg9: memref<1x8x32xf32, #tpu.memory_space<vmem>>, %arg10: memref<8x32xf32, #tpu.memory_space<vmem>>) attributes {dimension_semantics = [#tpu.dimension_semantics<parallel>], iteration_bounds = array<i64: 2>, scalar_prefetch = 0 : i64, scratch_operands = 1 : i64, tpu.core_type = #tpu.core_type<tc>, window_params = [{transform_indices = @transform_0, window_bounds = array<i64: 1, 8, 32>}, {transform_indices = @transform_1, window_bounds = array<i64: 1, 8, 32>}, {transform_indices = @transform_2, window_bounds = array<i64: 1, 8, 32>}, {pipeline_mode = #tpu.pipeline_mode<synchronous>, transform_indices = @transform_3, window_bounds = array<i64: 32, 32>}, {pipeline_mode = #tpu.pipeline_mode<synchronous>, transform_indices = @transform_4, window_bounds = array<i64: 32, 32>}, {pipeline_mode = #tpu.pipeline_mode<synchronous>, transform_indices = @transform_5, window_bounds = array<i64: 32, 32>}, {pipeline_mode = #tpu.pipeline_mode<synchronous>, transform_indices = @transform_6, window_bounds = array<i64: 32, 32>}, {pipeline_mode = #tpu.pipeline_mode<synchronous>, transform_indices = @transform_7, window_bounds = array<i64: 1, 32>}, {transform_indices = @transform_8, window_bounds = array<i64: 1, 8, 32>}]} {
    %c0 = arith.constant 0 : index
    %c0_0 = arith.constant 0 : index
    %c0_1 = arith.constant 0 : index
    %0 = vector.load %arg1[%c0, %c0_0, %c0_1] : memref<1x8x32xf32, #tpu.memory_space<vmem>>, vector<1x8x32xf32>
    %1 = vector.shape_cast %0 : vector<1x8x32xf32> to vector<8x32xf32>
    %c0_2 = arith.constant 0 : index
    %c0_3 = arith.constant 0 : index
    %c0_4 = arith.constant 0 : index
    %2 = vector.load %arg2[%c0_2, %c0_3, %c0_4] : memref<1x8x32xf32, #tpu.memory_space<vmem>>, vector<1x8x32xf32>
    %3 = vector.shape_cast %2 : vector<1x8x32xf32> to vector<8x32xf32>
    %c0_5 = arith.constant 0 : index
    %c0_6 = arith.constant 0 : index
    %c0_7 = arith.constant 0 : index
    %4 = vector.load %arg3[%c0_5, %c0_6, %c0_7] : memref<1x8x32xf32, #tpu.memory_space<vmem>>, vector<1x8x32xf32>
    %5 = vector.shape_cast %4 : vector<1x8x32xf32> to vector<8x32xf32>
    %c0_8 = arith.constant 0 : index
    %c0_9 = arith.constant 0 : index
    %6 = vector.load %arg4[%c0_8, %c0_9] : memref<32x32xf32, #tpu.memory_space<vmem>>, vector<32x32xf32>
    %cst = arith.constant dense<0.000000e+00> : vector<8x32xf32>
    %7 = tpu.matmul %1, %6, %cst {dimension_numbers = #tpu.dot_dimension_numbers<[1], [0], [0], [1], [0, 0, 1, 1], [], []>} : vector<8x32xf32>, vector<32x32xf32>, vector<8x32xf32> -> vector<8x32xf32>
    %cst_10 = arith.constant 0.176776692 : f32
    %8 = vector.broadcast %cst_10 : f32 to vector<8x32xf32>
    %9 = arith.mulf %7, %8 : vector<8x32xf32>
    %c0_11 = arith.constant 0 : index
    %c0_12 = arith.constant 0 : index
    %10 = vector.load %arg5[%c0_11, %c0_12] : memref<32x32xf32, #tpu.memory_space<vmem>>, vector<32x32xf32>
    %cst_13 = arith.constant dense<0.000000e+00> : vector<8x32xf32>
    %11 = tpu.matmul %3, %10, %cst_13 {dimension_numbers = #tpu.dot_dimension_numbers<[1], [0], [0], [1], [0, 0, 1, 1], [], []>} : vector<8x32xf32>, vector<32x32xf32>, vector<8x32xf32> -> vector<8x32xf32>
    %c0_14 = arith.constant 0 : index
    %c0_15 = arith.constant 0 : index
    %12 = vector.load %arg6[%c0_14, %c0_15] : memref<32x32xf32, #tpu.memory_space<vmem>>, vector<32x32xf32>
    %cst_16 = arith.constant dense<0.000000e+00> : vector<8x32xf32>
    %13 = tpu.matmul %5, %12, %cst_16 {dimension_numbers = #tpu.dot_dimension_numbers<[1], [0], [0], [1], [0, 0, 1, 1], [], []>} : vector<8x32xf32>, vector<32x32xf32>, vector<8x32xf32> -> vector<8x32xf32>
    %14 = vector.extract_strided_slice %9 {offsets = [0, 0], sizes = [8, 8], strides = [1, 1]} : vector<8x32xf32> to vector<8x8xf32>
    %15 = vector.extract_strided_slice %11 {offsets = [0, 0], sizes = [8, 8], strides = [1, 1]} : vector<8x32xf32> to vector<8x8xf32>
    %16 = vector.extract_strided_slice %13 {offsets = [0, 0], sizes = [8, 8], strides = [1, 1]} : vector<8x32xf32> to vector<8x8xf32>
    %cst_17 = arith.constant dense<0.000000e+00> : vector<8x8xf32>
    %17 = tpu.matmul %14, %15, %cst_17 {dimension_numbers = #tpu.dot_dimension_numbers<[1], [1], [0], [0], [0, 0, 1, 0], [], []>} : vector<8x8xf32>, vector<8x8xf32>, vector<8x8xf32> -> vector<8x8xf32>
    %cst_18 = arith.constant dense<0xFF800000> : vector<8xf32>
    %18 = vector.multi_reduction <maximumf>, %17, %cst_18 [1] : vector<8x8xf32> to vector<8xf32>
    %19 = vector.shape_cast %18 : vector<8xf32> to vector<8x1xf32>
    %20 = vector.broadcast %19 : vector<8x1xf32> to vector<8x8xf32>
    %21 = arith.subf %17, %20 : vector<8x8xf32>
    %22 = math.exp %21 : vector<8x8xf32>
    %cst_19 = arith.constant dense<0.000000e+00> : vector<8xf32>
    %23 = vector.multi_reduction <add>, %22, %cst_19 [1] : vector<8x8xf32> to vector<8xf32>
    %24 = vector.shape_cast %23 : vector<8xf32> to vector<8x1xf32>
    %25 = tpu.reciprocal %24 : vector<8x1xf32> -> vector<8x1xf32>
    %26 = vector.broadcast %25 : vector<8x1xf32> to vector<8x8xf32>
    %27 = arith.mulf %22, %26 : vector<8x8xf32>
    %cst_20 = arith.constant dense<0.000000e+00> : vector<8x8xf32>
    %28 = tpu.matmul %27, %16, %cst_20 {dimension_numbers = #tpu.dot_dimension_numbers<[1], [0], [0], [1], [0, 0, 1, 1], [], []>} : vector<8x8xf32>, vector<8x8xf32>, vector<8x8xf32> -> vector<8x8xf32>
    %c0_21 = arith.constant 0 : index
    %c0_22 = arith.constant 0 : index
    %29 = vector.load %arg10[%c0_21, %c0_22] : memref<8x32xf32, #tpu.memory_space<vmem>>, vector<8x8xf32>
    tpu.vector_store %arg10[%c0_21, %c0_22], %28 {strides = array<i32>} : memref<8x32xf32, #tpu.memory_space<vmem>>, vector<8x8xf32>,
    %30 = vector.extract_strided_slice %9 {offsets = [0, 8], sizes = [8, 8], strides = [1, 1]} : vector<8x32xf32> to vector<8x8xf32>
    %31 = vector.extract_strided_slice %11 {offsets = [0, 8], sizes = [8, 8], strides = [1, 1]} : vector<8x32xf32> to vector<8x8xf32>
    %32 = vector.extract_strided_slice %13 {offsets = [0, 8], sizes = [8, 8], strides = [1, 1]} : vector<8x32xf32> to vector<8x8xf32>
    %cst_23 = arith.constant dense<0.000000e+00> : vector<8x8xf32>
    %33 = tpu.matmul %30, %31, %cst_23 {dimension_numbers = #tpu.dot_dimension_numbers<[1], [1], [0], [0], [0, 0, 1, 0], [], []>} : vector<8x8xf32>, vector<8x8xf32>, vector<8x8xf32> -> vector<8x8xf32>
    %cst_24 = arith.constant dense<0xFF800000> : vector<8xf32>
    %34 = vector.multi_reduction <maximumf>, %33, %cst_24 [1] : vector<8x8xf32> to vector<8xf32>
    %35 = vector.shape_cast %34 : vector<8xf32> to vector<8x1xf32>
    %36 = vector.broadcast %35 : vector<8x1xf32> to vector<8x8xf32>
    %37 = arith.subf %33, %36 : vector<8x8xf32>
    %38 = math.exp %37 : vector<8x8xf32>
    %cst_25 = arith.constant dense<0.000000e+00> : vector<8xf32>
    %39 = vector.multi_reduction <add>, %38, %cst_25 [1] : vector<8x8xf32> to vector<8xf32>
    %40 = vector.shape_cast %39 : vector<8xf32> to vector<8x1xf32>
    %41 = tpu.reciprocal %40 : vector<8x1xf32> -> vector<8x1xf32>
    %42 = vector.broadcast %41 : vector<8x1xf32> to vector<8x8xf32>
    %43 = arith.mulf %38, %42 : vector<8x8xf32>
    %cst_26 = arith.constant dense<0.000000e+00> : vector<8x8xf32>
    %44 = tpu.matmul %43, %32, %cst_26 {dimension_numbers = #tpu.dot_dimension_numbers<[1], [0], [0], [1], [0, 0, 1, 1], [], []>} : vector<8x8xf32>, vector<8x8xf32>, vector<8x8xf32> -> vector<8x8xf32>
    %c0_27 = arith.constant 0 : index
    %c8 = arith.constant 8 : index
    %45 = vector.load %arg10[%c0_27, %c8] : memref<8x32xf32, #tpu.memory_space<vmem>>, vector<8x8xf32>
    tpu.vector_store %arg10[%c0_27, %c8], %44 {strides = array<i32>} : memref<8x32xf32, #tpu.memory_space<vmem>>, vector<8x8xf32>,
    %46 = vector.extract_strided_slice %9 {offsets = [0, 16], sizes = [8, 8], strides = [1, 1]} : vector<8x32xf32> to vector<8x8xf32>
    %47 = vector.extract_strided_slice %11 {offsets = [0, 16], sizes = [8, 8], strides = [1, 1]} : vector<8x32xf32> to vector<8x8xf32>
    %48 = vector.extract_strided_slice %13 {offsets = [0, 16], sizes = [8, 8], strides = [1, 1]} : vector<8x32xf32> to vector<8x8xf32>
    %cst_28 = arith.constant dense<0.000000e+00> : vector<8x8xf32>
    %49 = tpu.matmul %46, %47, %cst_28 {dimension_numbers = #tpu.dot_dimension_numbers<[1], [1], [0], [0], [0, 0, 1, 0], [], []>} : vector<8x8xf32>, vector<8x8xf32>, vector<8x8xf32> -> vector<8x8xf32>
    %cst_29 = arith.constant dense<0xFF800000> : vector<8xf32>
    %50 = vector.multi_reduction <maximumf>, %49, %cst_29 [1] : vector<8x8xf32> to vector<8xf32>
    %51 = vector.shape_cast %50 : vector<8xf32> to vector<8x1xf32>
    %52 = vector.broadcast %51 : vector<8x1xf32> to vector<8x8xf32>
    %53 = arith.subf %49, %52 : vector<8x8xf32>
    %54 = math.exp %53 : vector<8x8xf32>
    %cst_30 = arith.constant dense<0.000000e+00> : vector<8xf32>
    %55 = vector.multi_reduction <add>, %54, %cst_30 [1] : vector<8x8xf32> to vector<8xf32>
    %56 = vector.shape_cast %55 : vector<8xf32> to vector<8x1xf32>
    %57 = tpu.reciprocal %56 : vector<8x1xf32> -> vector<8x1xf32>
    %58 = vector.broadcast %57 : vector<8x1xf32> to vector<8x8xf32>
    %59 = arith.mulf %54, %58 : vector<8x8xf32>
    %cst_31 = arith.constant dense<0.000000e+00> : vector<8x8xf32>
    %60 = tpu.matmul %59, %48, %cst_31 {dimension_numbers = #tpu.dot_dimension_numbers<[1], [0], [0], [1], [0, 0, 1, 1], [], []>} : vector<8x8xf32>, vector<8x8xf32>, vector<8x8xf32> -> vector<8x8xf32>
    %c0_32 = arith.constant 0 : index
    %c16 = arith.constant 16 : index
    %61 = vector.load %arg10[%c0_32, %c16] : memref<8x32xf32, #tpu.memory_space<vmem>>, vector<8x8xf32>
    tpu.vector_store %arg10[%c0_32, %c16], %60 {strides = array<i32>} : memref<8x32xf32, #tpu.memory_space<vmem>>, vector<8x8xf32>,
    %62 = vector.extract_strided_slice %9 {offsets = [0, 24], sizes = [8, 8], strides = [1, 1]} : vector<8x32xf32> to vector<8x8xf32>
    %63 = vector.extract_strided_slice %11 {offsets = [0, 24], sizes = [8, 8], strides = [1, 1]} : vector<8x32xf32> to vector<8x8xf32>
    %64 = vector.extract_strided_slice %13 {offsets = [0, 24], sizes = [8, 8], strides = [1, 1]} : vector<8x32xf32> to vector<8x8xf32>
    %cst_33 = arith.constant dense<0.000000e+00> : vector<8x8xf32>
    %65 = tpu.matmul %62, %63, %cst_33 {dimension_numbers = #tpu.dot_dimension_numbers<[1], [1], [0], [0], [0, 0, 1, 0], [], []>} : vector<8x8xf32>, vector<8x8xf32>, vector<8x8xf32> -> vector<8x8xf32>
    %cst_34 = arith.constant dense<0xFF800000> : vector<8xf32>
    %66 = vector.multi_reduction <maximumf>, %65, %cst_34 [1] : vector<8x8xf32> to vector<8xf32>
    %67 = vector.shape_cast %66 : vector<8xf32> to vector<8x1xf32>
    %68 = vector.broadcast %67 : vector<8x1xf32> to vector<8x8xf32>
    %69 = arith.subf %65, %68 : vector<8x8xf32>
    %70 = math.exp %69 : vector<8x8xf32>
    %cst_35 = arith.constant dense<0.000000e+00> : vector<8xf32>
    %71 = vector.multi_reduction <add>, %70, %cst_35 [1] : vector<8x8xf32> to vector<8xf32>
    %72 = vector.shape_cast %71 : vector<8xf32> to vector<8x1xf32>
    %73 = tpu.reciprocal %72 : vector<8x1xf32> -> vector<8x1xf32>
    %74 = vector.broadcast %73 : vector<8x1xf32> to vector<8x8xf32>
    %75 = arith.mulf %70, %74 : vector<8x8xf32>
    %cst_36 = arith.constant dense<0.000000e+00> : vector<8x8xf32>
    %76 = tpu.matmul %75, %64, %cst_36 {dimension_numbers = #tpu.dot_dimension_numbers<[1], [0], [0], [1], [0, 0, 1, 1], [], []>} : vector<8x8xf32>, vector<8x8xf32>, vector<8x8xf32> -> vector<8x8xf32>
    %c0_37 = arith.constant 0 : index
    %c24 = arith.constant 24 : index
    %77 = vector.load %arg10[%c0_37, %c24] : memref<8x32xf32, #tpu.memory_space<vmem>>, vector<8x8xf32>
    tpu.vector_store %arg10[%c0_37, %c24], %76 {strides = array<i32>} : memref<8x32xf32, #tpu.memory_space<vmem>>, vector<8x8xf32>,
    %c0_38 = arith.constant 0 : index
    %c0_39 = arith.constant 0 : index
    %78 = vector.load %arg10[%c0_38, %c0_39] : memref<8x32xf32, #tpu.memory_space<vmem>>, vector<8x32xf32>
    %c0_40 = arith.constant 0 : index
    %c0_41 = arith.constant 0 : index
    %79 = vector.load %arg7[%c0_40, %c0_41] : memref<32x32xf32, #tpu.memory_space<vmem>>, vector<32x32xf32>
    %cst_42 = arith.constant dense<0.000000e+00> : vector<8x32xf32>
    %80 = tpu.matmul %78, %79, %cst_42 {dimension_numbers = #tpu.dot_dimension_numbers<[1], [0], [0], [1], [0, 0, 1, 1], [], []>} : vector<8x32xf32>, vector<32x32xf32>, vector<8x32xf32> -> vector<8x32xf32>
    %c0_43 = arith.constant 0 : index
    %c0_44 = arith.constant 0 : index
    %81 = vector.load %arg8[%c0_43, %c0_44] : memref<1x32xf32, #tpu.memory_space<vmem>>, vector<1x32xf32>
    %82 = vector.broadcast %81 : vector<1x32xf32> to vector<8x32xf32>
    %83 = arith.addf %80, %82 : vector<8x32xf32>
    %c0_45 = arith.constant 0 : index
    %c0_46 = arith.constant 0 : index
    %c0_47 = arith.constant 0 : index
    %84 = vector.load %arg9[%c0_45, %c0_46, %c0_47] : memref<1x8x32xf32, #tpu.memory_space<vmem>>, vector<1x8x32xf32>
    %85 = vector.shape_cast %84 : vector<1x8x32xf32> to vector<8x32xf32>
    %86 = vector.shape_cast %83 : vector<8x32xf32> to vector<1x8x32xf32>
    tpu.vector_store %arg9[%c0_45, %c0_46, %c0_47], %86 {strides = array<i32>} : memref<1x8x32xf32, #tpu.memory_space<vmem>>, vector<1x8x32xf32>,
    return
  }
  func.func @transform_0(%arg0: i32) -> (i32, i32, i32) {
    %c0_i32 = arith.constant 0 : i32
    %c0_i32_0 = arith.constant 0 : i32
    %c0_i32_1 = arith.constant 0 : i32
    return %arg0, %c0_i32, %c0_i32_0 : i32, i32, i32
  }
  func.func @transform_1(%arg0: i32) -> (i32, i32, i32) {
    %c0_i32 = arith.constant 0 : i32
    %c0_i32_0 = arith.constant 0 : i32
    %c0_i32_1 = arith.constant 0 : i32
    return %arg0, %c0_i32, %c0_i32_0 : i32, i32, i32
  }
  func.func @transform_2(%arg0: i32) -> (i32, i32, i32) {
    %c0_i32 = arith.constant 0 : i32
    %c0_i32_0 = arith.constant 0 : i32
    %c0_i32_1 = arith.constant 0 : i32
    return %arg0, %c0_i32, %c0_i32_0 : i32, i32, i32
  }
  func.func @transform_3(%arg0: i32) -> (i32, i32) {
    %c0_i32 = arith.constant 0 : i32
    %c0_i32_0 = arith.constant 0 : i32
    %c0_i32_1 = arith.constant 0 : i32
    return %c0_i32, %c0_i32_0 : i32, i32
  }
  func.func @transform_4(%arg0: i32) -> (i32, i32) {
    %c0_i32 = arith.constant 0 : i32
    %c0_i32_0 = arith.constant 0 : i32
    %c0_i32_1 = arith.constant 0 : i32
    return %c0_i32, %c0_i32_0 : i32, i32
  }
  func.func @transform_5(%arg0: i32) -> (i32, i32) {
    %c0_i32 = arith.constant 0 : i32
    %c0_i32_0 = arith.constant 0 : i32
    %c0_i32_1 = arith.constant 0 : i32
    return %c0_i32, %c0_i32_0 : i32, i32
  }
  func.func @transform_6(%arg0: i32) -> (i32, i32) {
    %c0_i32 = arith.constant 0 : i32
    %c0_i32_0 = arith.constant 0 : i32
    %c0_i32_1 = arith.constant 0 : i32
    return %c0_i32, %c0_i32_0 : i32, i32
  }
  func.func @transform_7(%arg0: i32) -> (i32, i32) {
    %c0_i32 = arith.constant 0 : i32
    %c0_i32_0 = arith.constant 0 : i32
    %c0_i32_1 = arith.constant 0 : i32
    return %c0_i32, %c0_i32_0 : i32, i32
  }
  func.func @transform_8(%arg0: i32) -> (i32, i32, i32) {
    %c0_i32 = arith.constant 0 : i32
    %c0_i32_0 = arith.constant 0 : i32
    %c0_i32_1 = arith.constant 0 : i32
    return %arg0, %c0_i32, %c0_i32_0 : i32, i32, i32
  }
}

</mosaic_0001>

<llo_original>
// kernel: tpu_custom_call.1
$region0: #{tpu_custom_call.1}
  #allocation0 [shape = 'u32[]', space=smem, size = 0x4, offset = 0x4, fixed_abs, tag = 'smem constant byte address 0x4 - core index']
  #allocation1 [shape = 'u32[144,128]{1,0:T(1,128)}', space=vmem, size = 0x12000, scoped, tag = 'internal scratch']
  #allocation2 [shape = 'f32[8,32]{1,0:T(8,128)}', space=vmem, size = 0x1000, scoped, tag = 'scratch operand']
  %s0 = inlined_call_operand.hbm [shape: f32[2,8,32], index: 0, kind: input, shape index: {}]
  %s1 = inlined_call_operand.hbm [shape: f32[2,8,32], index: 1, kind: input, shape index: {}]
  %s2 = inlined_call_operand.hbm [shape: f32[2,8,32], index: 2, kind: input, shape index: {}]
  %s3 = inlined_call_operand.hbm [shape: f32[32,32], index: 3, kind: input, shape index: {}]
  %s4 = inlined_call_operand.hbm [shape: f32[32,32], index: 4, kind: input, shape index: {}]
  %s5 = inlined_call_operand.hbm [shape: f32[32,32], index: 5, kind: input, shape index: {}]
  %s6 = inlined_call_operand.hbm [shape: f32[32,32], index: 6, kind: input, shape index: {}]
  %s7 = inlined_call_operand.vmem [shape: f32[1,32], index: 7, kind: input, shape index: {}]
  %s8 = inlined_call_operand.hbm [shape: f32[2,8,32], index: 8, kind: output, shape index: {}]
  %s9 = sld [smem:[#allocation0]]
  $region93: #{tpu_custom_call.1} parent=0
    _
  %s11 = ssub.s32 1, %s9
  %s12 = scalar_select 0, %s11, %s9
  $region1: #{tpu_custom_call.1} parent=0
    #allocation3 [shape = 'u8[8192]{0}', space=vmem, size = 0x2000, scoped, tag = 'input window, operand 0']
    #allocation4 [shape = 's32[2]{0}', space=sflag, size = 0x8, scoped, tag = 'scoped memory for tpu_custom_call.1']
    #allocation5 [shape = 's32[2]{0}', space=sflag, size = 0x8, scoped, tag = 'scoped memory for tpu_custom_call.1']
    #allocation6 [shape = 'u8[8192]{0}', space=vmem, size = 0x2000, scoped, tag = 'input window, operand 1']
    #allocation7 [shape = 's32[2]{0}', space=sflag, size = 0x8, scoped, tag = 'scoped memory for tpu_custom_call.1']
    #allocation8 [shape = 'u8[8192]{0}', space=vmem, size = 0x2000, scoped, tag = 'input window, operand 2']
    #allocation9 [shape = 'u8[16384]{0}', space=vmem, size = 0x4000, scoped, tag = 'input window, operand 3, single buffered']
    #allocation10 [shape = 's32[1]{0}', space=sflag, size = 0x4, scoped, tag = 'scoped memory for tpu_custom_call.1']
    #allocation11 [shape = 'u8[16384]{0}', space=vmem, size = 0x4000, scoped, tag = 'input window, operand 4, single buffered']
    #allocation12 [shape = 'u8[16384]{0}', space=vmem, size = 0x4000, scoped, tag = 'input window, operand 5, single buffered']
    #allocation13 [shape = 's32[1]{0}', space=sflag, size = 0x4, scoped, tag = 'scoped memory for tpu_custom_call.1']
    #allocation14 [shape = 'u8[16384]{0}', space=vmem, size = 0x4000, scoped, tag = 'input window, operand 6, single buffered']
    #allocation15 [shape = 'u8[8192]{0}', space=vmem, size = 0x2000, scoped, tag = 'output window, operand 0']
    %13 = vsyncpa [#allocation4], 0
    %s14 = scalar_lea.sflag [#allocation4], 1
    %15 = vsyncpa %s14, 0
    %16 = vsyncpa [#allocation7], 0
    %s17 = scalar_lea.sflag [#allocation7], 1
    %18 = vsyncpa %s17, 0
    %19 = vsyncpa [#allocation10], 0
    %20 = vsyncpa [#allocation13], 0
    %21 = vsyncpa [#allocation5], 0
    %s22 = scalar_lea.sflag [#allocation5], 1
    %23 = vsyncpa %s22, 0
    loop: start=0, step=1, limit=4
    $region2: #{tpu_custom_call.1} parent=1 // loop_pre_header
      _
    $region3: #{tpu_custom_call.1} parent=1 // loop_header
      %s25 = sphi 0, %s29
      %p26 = scmp.ge.s32.totalorder %s25, 4
      %s35 = sphi 0, %s37
      %s38 = sphi 0, %s35
      %s39 = sphi 0, %s38
      %s55 = sphi 0, %s39
      %s61 = sphi 0, %s63
      %s64 = sphi 0, %s61
      %s65 = sphi 0, %s64
      %s81 = sphi 0, %s65
      %s87 = sphi 0, %s89
      %s90 = sphi 0, %s87
      %s91 = sphi 0, %s90
      %s107 = sphi 0, %s91
      %s111 = sphi 0, %s111
      %s113 = sphi 0, %s111
      %s114 = sphi 0, %s113
      %s128 = sphi 0, %s114
      %s132 = sphi 0, %s132
      %s134 = sphi 0, %s132
      %s135 = sphi 0, %s134
      %s149 = sphi 0, %s135
      %s153 = sphi 0, %s153
      %s155 = sphi 0, %s153
      %s156 = sphi 0, %s155
      %s170 = sphi 0, %s156
      %s174 = sphi 0, %s174
      %s176 = sphi 0, %s174
      %s177 = sphi 0, %s176
      %s191 = sphi 0, %s177
      %s195 = sphi 0, %s195
      %s197 = sphi 0, %s195
      %s198 = sphi 0, %s197
      %s212 = sphi 0, %s198
      %s218 = sphi 0, %s220
      %s221 = sphi 0, %s218
      %s222 = sphi 0, %s221
      %s238 = sphi 0, %s222
    $region4: #{tpu_custom_call.1} parent=1 // loop_header_branch
      %28 = sbr.rel (%p26) target = $region8
    $region5: #{tpu_custom_call.1} parent=1 // loop_body
      %s30 = ssub.s32 %s25, 1
      %s31 = ssub.s32 %s25, 2
      %s32 = sadd.s32 %s25, 1
      %s33 = ssub.s32 %s25, %s32
      %p34 = scmp.eq.s32.totalorder %s33, 0
      %s36 = sadd.s32 %s35, 1
      %s37 = scalar_select %p34, %s35, %s36
      %p40 = pneg %p34
      %p41 = scmp.eq.s32.totalorder %s25, 1
      %p42 = por %p40, %p41
      %p43 = scmp.ne.s32.totalorder %s35, %s38
      %p44 = scmp.eq.s32.totalorder %s25, 0
      %p45 = por %p43, %p44
      %p46 = scmp.ne.s32.totalorder %s35, %s38
      %p47 = scmp.eq.s32.totalorder %s30, 1
      %p48 = por %p46, %p47
      %p49 = scmp.ne.s32.totalorder %s38, %s39
      %p50 = scmp.eq.s32.totalorder %s30, 0
      %p51 = por %p49, %p50
      %p52 = scmp.ne.s32.totalorder %s38, %s39
      %p53 = scmp.eq.s32.totalorder %s31, 1
      %p54 = por %p52, %p53
      %p56 = scmp.ne.s32.totalorder %s39, %s55
      %p57 = scmp.eq.s32.totalorder %s31, 0
      %p58 = por %p56, %p57
      %s59 = ssub.s32 %s25, %s32
      %p60 = scmp.eq.s32.totalorder %s59, 0
      %s62 = sadd.s32 %s61, 1
      %s63 = scalar_select %p60, %s61, %s62
      %p66 = pneg %p60
      %p67 = scmp.eq.s32.totalorder %s25, 1
      %p68 = por %p66, %p67
      %p69 = scmp.ne.s32.totalorder %s61, %s64
      %p70 = scmp.eq.s32.totalorder %s25, 0
      %p71 = por %p69, %p70
      %p72 = scmp.ne.s32.totalorder %s61, %s64
      %p73 = scmp.eq.s32.totalorder %s30, 1
      %p74 = por %p72, %p73
      %p75 = scmp.ne.s32.totalorder %s64, %s65
      %p76 = scmp.eq.s32.totalorder %s30, 0
      %p77 = por %p75, %p76
      %p78 = scmp.ne.s32.totalorder %s64, %s65
      %p79 = scmp.eq.s32.totalorder %s31, 1
      %p80 = por %p78, %p79
      %p82 = scmp.ne.s32.totalorder %s65, %s81
      %p83 = scmp.eq.s32.totalorder %s31, 0
      %p84 = por %p82, %p83
      %s85 = ssub.s32 %s25, %s32
      %p86 = scmp.eq.s32.totalorder %s85, 0
      %s88 = sadd.s32 %s87, 1
      %s89 = scalar_select %p86, %s87, %s88
      %p92 = pneg %p86
      %p93 = scmp.eq.s32.totalorder %s25, 1
      %p94 = por %p92, %p93
      %p95 = scmp.ne.s32.totalorder %s87, %s90
      %p96 = scmp.eq.s32.totalorder %s25, 0
      %p97 = por %p95, %p96
      %p98 = scmp.ne.s32.totalorder %s87, %s90
      %p99 = scmp.eq.s32.totalorder %s30, 1
      %p100 = por %p98, %p99
      %p101 = scmp.ne.s32.totalorder %s90, %s91
      %p102 = scmp.eq.s32.totalorder %s30, 0
      %p103 = por %p101, %p102
      %p104 = scmp.ne.s32.totalorder %s90, %s91
      %p105 = scmp.eq.s32.totalorder %s31, 1
      %p106 = por %p104, %p105
      %p108 = scmp.ne.s32.totalorder %s91, %s107
      %p109 = scmp.eq.s32.totalorder %s31, 0
      %p110 = por %p108, %p109
      %s112 = sadd.s32 %s111, 1
      %p115 = scmp.eq.s32.totalorder %s25, 1
      %p116 = scmp.ne.s32.totalorder %s111, %s113
      %p117 = scmp.eq.s32.totalorder %s25, 0
      %p118 = por %p116, %p117
      %p119 = scmp.ne.s32.totalorder %s111, %s113
      %p120 = scmp.eq.s32.totalorder %s30, 1
      %p121 = por %p119, %p120
      %p122 = scmp.ne.s32.totalorder %s113, %s114
      %p123 = scmp.eq.s32.totalorder %s30, 0
      %p124 = por %p122, %p123
      %p125 = scmp.ne.s32.totalorder %s113, %s114
      %p126 = scmp.eq.s32.totalorder %s31, 1
      %p127 = por %p125, %p126
      %p129 = scmp.ne.s32.totalorder %s114, %s128
      %p130 = scmp.eq.s32.totalorder %s31, 0
      %p131 = por %p129, %p130
      %s133 = sadd.s32 %s132, 1
      %p136 = scmp.eq.s32.totalorder %s25, 1
      %p137 = scmp.ne.s32.totalorder %s132, %s134
      %p138 = scmp.eq.s32.totalorder %s25, 0
      %p139 = por %p137, %p138
      %p140 = scmp.ne.s32.totalorder %s132, %s134
      %p141 = scmp.eq.s32.totalorder %s30, 1
      %p142 = por %p140, %p141
      %p143 = scmp.ne.s32.totalorder %s134, %s135
      %p144 = scmp.eq.s32.totalorder %s30, 0
      %p145 = por %p143, %p144
      %p146 = scmp.ne.s32.totalorder %s134, %s135
      %p147 = scmp.eq.s32.totalorder %s31, 1
      %p148 = por %p146, %p147
      %p150 = scmp.ne.s32.totalorder %s135, %s149
      %p151 = scmp.eq.s32.totalorder %s31, 0
      %p152 = por %p150, %p151
      %s154 = sadd.s32 %s153, 1
      %p157 = scmp.eq.s32.totalorder %s25, 1
      %p158 = scmp.ne.s32.totalorder %s153, %s155
      %p159 = scmp.eq.s32.totalorder %s25, 0
      %p160 = por %p158, %p159
      %p161 = scmp.ne.s32.totalorder %s153, %s155
      %p162 = scmp.eq.s32.totalorder %s30, 1
      %p163 = por %p161, %p162
      %p164 = scmp.ne.s32.totalorder %s155, %s156
      %p165 = scmp.eq.s32.totalorder %s30, 0
      %p166 = por %p164, %p165
      %p167 = scmp.ne.s32.totalorder %s155, %s156
      %p168 = scmp.eq.s32.totalorder %s31, 1
      %p169 = por %p167, %p168
      %p171 = scmp.ne.s32.totalorder %s156, %s170
      %p172 = scmp.eq.s32.totalorder %s31, 0
      %p173 = por %p171, %p172
      %s175 = sadd.s32 %s174, 1
      %p178 = scmp.eq.s32.totalorder %s25, 1
      %p179 = scmp.ne.s32.totalorder %s174, %s176
      %p180 = scmp.eq.s32.totalorder %s25, 0
      %p181 = por %p179, %p180
      %p182 = scmp.ne.s32.totalorder %s174, %s176
      %p183 = scmp.eq.s32.totalorder %s30, 1
      %p184 = por %p182, %p183
      %p185 = scmp.ne.s32.totalorder %s176, %s177
      %p186 = scmp.eq.s32.totalorder %s30, 0
      %p187 = por %p185, %p186
      %p188 = scmp.ne.s32.totalorder %s176, %s177
      %p189 = scmp.eq.s32.totalorder %s31, 1
      %p190 = por %p188, %p189
      %p192 = scmp.ne.s32.totalorder %s177, %s191
      %p193 = scmp.eq.s32.totalorder %s31, 0
      %p194 = por %p192, %p193
      %s196 = sadd.s32 %s195, 1
      %p199 = scmp.eq.s32.totalorder %s25, 1
      %p200 = scmp.ne.s32.totalorder %s195, %s197
      %p201 = scmp.eq.s32.totalorder %s25, 0
      %p202 = por %p200, %p201
      %p203 = scmp.ne.s32.totalorder %s195, %s197
      %p204 = scmp.eq.s32.totalorder %s30, 1
      %p205 = por %p203, %p204
      %p206 = scmp.ne.s32.totalorder %s197, %s198
      %p207 = scmp.eq.s32.totalorder %s30, 0
      %p208 = por %p206, %p207
      %p209 = scmp.ne.s32.totalorder %s197, %s198
      %p210 = scmp.eq.s32.totalorder %s31, 1
      %p211 = por %p209, %p210
      %p213 = scmp.ne.s32.totalorder %s198, %s212
      %p214 = scmp.eq.s32.totalorder %s31, 0
      %p215 = por %p213, %p214
      %s216 = ssub.s32 %s25, %s32
      %p217 = scmp.eq.s32.totalorder %s216, 0
      %s219 = sadd.s32 %s218, 1
      %s220 = scalar_select %p217, %s218, %s219
      %p223 = pneg %p217
      %p224 = scmp.eq.s32.totalorder %s25, 1
      %p225 = por %p223, %p224
      %p226 = scmp.ne.s32.totalorder %s218, %s221
      %p227 = scmp.eq.s32.totalorder %s25, 0
      %p228 = por %p226, %p227
      %p229 = scmp.ne.s32.totalorder %s218, %s221
      %p230 = scmp.eq.s32.totalorder %s30, 1
      %p231 = por %p229, %p230
      %p232 = scmp.ne.s32.totalorder %s221, %s222
      %p233 = scmp.eq.s32.totalorder %s30, 0
      %p234 = por %p232, %p233
      %p235 = scmp.ne.s32.totalorder %s221, %s222
      %p236 = scmp.eq.s32.totalorder %s31, 1
      %p237 = por %p235, %p236
      %p239 = scmp.ne.s32.totalorder %s222, %s238
      %p240 = scmp.eq.s32.totalorder %s31, 0
      %p241 = por %p239, %p240
      %p242 = scmp.le.s32.totalorder 1, %s25
      %p243 = scmp.lt.s32.totalorder %s25, 3
      %p244 = pnand %p242, %p243
      %p245 = pneg %p244
      // Predicated region
      $region9: #{tpu_custom_call.1} parent=5 // pred_check
        _
      $region10: #{tpu_custom_call.1} parent=5 // pred_check_branch
        %247 = sbr.rel (%p244) target = $region12
      $region11: #{tpu_custom_call.1} parent=5 // pred_region
        %s248 = ssub.s32 %s25, 1
        // Predicated region
        $region13: #{tpu_custom_call.1} parent=11 // pred_check
          %p249 = pneg %p124
        $region14: #{tpu_custom_call.1} parent=11 // pred_check_branch
          %251 = sbr.rel (%p249) target = $region16
        $region15: #{tpu_custom_call.1} parent=11 // pred_region
          %s253 = ssub.s32 512, 512
          %254 = vsyncadd [#allocation10], %s253
          %s255 = sshll.u32 [#allocation9], 4
          %s256 = int_to_ptr.vmem [resolvable:$true] %s255
          %261 = dma.hbm_to_vmem [thread:$0]  %s3, 512, %s256, [#allocation10], 128, 128, 8
        $region16: #{tpu_custom_call.1} parent=11 // pred_fallthru
          _
        // Predicated region
        $region17: #{tpu_custom_call.1} parent=11 // pred_check
          %p262 = pneg %p145
        $region18: #{tpu_custom_call.1} parent=11 // pred_check_branch
          %264 = sbr.rel (%p262) target = $region20
        $region19: #{tpu_custom_call.1} parent=11 // pred_region
          %s266 = ssub.s32 512, 512
          %267 = vsyncadd [#allocation10], %s266
          %s268 = sshll.u32 [#allocation11], 4
          %s269 = int_to_ptr.vmem [resolvable:$true] %s268
          %274 = dma.hbm_to_vmem [thread:$0]  %s4, 512, %s269, [#allocation10], 128, 128, 8
        $region20: #{tpu_custom_call.1} parent=11 // pred_fallthru
          _
        // Predicated region
        $region21: #{tpu_custom_call.1} parent=11 // pred_check
          %p275 = pneg %p166
        $region22: #{tpu_custom_call.1} parent=11 // pred_check_branch
          %277 = sbr.rel (%p275) target = $region24
        $region23: #{tpu_custom_call.1} parent=11 // pred_region
          %s279 = ssub.s32 512, 512
          %280 = vsyncadd [#allocation13], %s279
          %s281 = sshll.u32 [#allocation12], 4
          %s282 = int_to_ptr.vmem [resolvable:$true] %s281
          %287 = dma.hbm_to_vmem [thread:$0]  %s5, 512, %s282, [#allocation13], 128, 128, 8
        $region24: #{tpu_custom_call.1} parent=11 // pred_fallthru
          _
        // Predicated region
        $region25: #{tpu_custom_call.1} parent=11 // pred_check
          %p288 = pneg %p187
        $region26: #{tpu_custom_call.1} parent=11 // pred_check_branch
          %290 = sbr.rel (%p288) target = $region28
        $region27: #{tpu_custom_call.1} parent=11 // pred_region
          %s292 = ssub.s32 512, 512
          %293 = vsyncadd [#allocation13], %s292
          %s294 = sshll.u32 [#allocation14], 4
          %s295 = int_to_ptr.vmem [resolvable:$true] %s294
          %300 = dma.hbm_to_vmem [thread:$0]  %s6, 512, %s295, [#allocation13], 128, 128, 8
        $region28: #{tpu_custom_call.1} parent=11 // pred_fallthru
          _
        // Predicated region
        $region29: #{tpu_custom_call.1} parent=11 // pred_check
          %p301 = pneg %p208
        $region30: #{tpu_custom_call.1} parent=11 // pred_check_branch
          %303 = sbr.rel (%p301) target = $region32
        $region31: #{tpu_custom_call.1} parent=11 // pred_region
          _
        $region32: #{tpu_custom_call.1} parent=11 // pred_fallthru
          _
      $region12: #{tpu_custom_call.1} parent=5 // pred_fallthru
        _
      %p304 = scmp.lt.s32.totalorder %s25, 2
      // Predicated region
      $region33: #{tpu_custom_call.1} parent=5 // pred_check
        %p305 = pneg %p304
      $region34: #{tpu_custom_call.1} parent=5 // pred_check_branch
        %307 = sbr.rel (%p305) target = $region36
      $region35: #{tpu_custom_call.1} parent=5 // pred_region
        // Predicated region
        $region37: #{tpu_custom_call.1} parent=35 // pred_check
          %p308 = pneg %p45
        $region38: #{tpu_custom_call.1} parent=35 // pred_check_branch
          %310 = sbr.rel (%p308) target = $region40
        $region39: #{tpu_custom_call.1} parent=35 // pred_region
          %s311 = sand.u32 %s35, 1
          %s312 = scalar_lea.sflag [#allocation4], %s311
          %s313 = sand.u32 %s35, 1
          %s314 = smul.addr %s313, 8
          %s315 = scalar_lea.vmem [#allocation3], %s314
          %s317 = ssub.s32 128, 128
          %318 = vsyncadd %s312, %s317
          %s319 = smul.addr %s25, 128
          %s320 = scalar_lea.hbm %s0, %s319
          %s322 = sshll.u32 %s315, 4
          %s323 = int_to_ptr.vmem [resolvable:$true] %s322
          %325 = dma.hbm_to_vmem [thread:$0]  %s320, 128, %s323, %s312
        $region40: #{tpu_custom_call.1} parent=35 // pred_fallthru
          _
        // Predicated region
        $region41: #{tpu_custom_call.1} parent=35 // pred_check
          %p326 = pneg %p71
        $region42: #{tpu_custom_call.1} parent=35 // pred_check_branch
          %328 = sbr.rel (%p326) target = $region44
        $region43: #{tpu_custom_call.1} parent=35 // pred_region
          %s329 = sand.u32 %s25, 1
          %s330 = scalar_lea.sflag [#allocation7], %s329
          %s331 = sand.u32 %s61, 1
          %s332 = smul.addr %s331, 8
          %s333 = scalar_lea.vmem [#allocation6], %s332
          %s335 = ssub.s32 128, 128
          %336 = vsyncadd %s330, %s335
          %s337 = smul.addr %s25, 128
          %s338 = scalar_lea.hbm %s1, %s337
          %s340 = sshll.u32 %s333, 4
          %s341 = int_to_ptr.vmem [resolvable:$true] %s340
          %343 = dma.hbm_to_vmem [thread:$0]  %s338, 128, %s341, %s330
        $region44: #{tpu_custom_call.1} parent=35 // pred_fallthru
          _
        // Predicated region
        $region45: #{tpu_custom_call.1} parent=35 // pred_check
          %p344 = pneg %p97
        $region46: #{tpu_custom_call.1} parent=35 // pred_check_branch
          %346 = sbr.rel (%p344) target = $region48
        $region47: #{tpu_custom_call.1} parent=35 // pred_region
          %s347 = sand.u32 %s25, 1
          %s348 = scalar_lea.sflag [#allocation7], %s347
          %s349 = sand.u32 %s87, 1
          %s350 = smul.addr %s349, 8
          %s351 = scalar_lea.vmem [#allocation8], %s350
          %s353 = ssub.s32 128, 128
          %354 = vsyncadd %s348, %s353
          %s355 = smul.addr %s25, 128
          %s356 = scalar_lea.hbm %s2, %s355
          %s358 = sshll.u32 %s351, 4
          %s359 = int_to_ptr.vmem [resolvable:$true] %s358
          %361 = dma.hbm_to_vmem [thread:$0]  %s356, 128, %s359, %s348
        $region48: #{tpu_custom_call.1} parent=35 // pred_fallthru
          _
      $region36: #{tpu_custom_call.1} parent=5 // pred_fallthru
        _
      %p362 = scmp.le.s32.totalorder 1, %s25
      %p363 = scmp.lt.s32.totalorder %s25, 3
      %p364 = pnand %p362, %p363
      %p365 = pneg %p364
      // Predicated region
      $region49: #{tpu_custom_call.1} parent=5 // pred_check
        _
      $region50: #{tpu_custom_call.1} parent=5 // pred_check_branch
        %367 = sbr.rel (%p364) target = $region52
      $region51: #{tpu_custom_call.1} parent=5 // pred_region
        %s368 = ssub.s32 %s25, 1
        %s369 = sand.u32 %s38, 1
        %s370 = scalar_lea.sflag [#allocation4], %s369
        %s371 = sand.u32 %s38, 1
        %s372 = smul.addr %s371, 8
        %s373 = scalar_lea.vmem [#allocation3], %s372
        // Predicated region
        $region53: #{tpu_custom_call.1} parent=51 // pred_check
          %p374 = pneg %p51
        $region54: #{tpu_custom_call.1} parent=51 // pred_check_branch
          %376 = sbr.rel (%p374) target = $region56
        $region55: #{tpu_custom_call.1} parent=51 // pred_region
          %377 = dma.done %s370, 128
        $region56: #{tpu_custom_call.1} parent=51 // pred_fallthru
          _
        %s378 = sand.u32 %s30, 1
        %s379 = scalar_lea.sflag [#allocation7], %s378
        %s380 = sand.u32 %s64, 1
        %s381 = smul.addr %s380, 8
        %s382 = scalar_lea.vmem [#allocation6], %s381
        // Predicated region
        $region57: #{tpu_custom_call.1} parent=51 // pred_check
          %p383 = pneg %p77
        $region58: #{tpu_custom_call.1} parent=51 // pred_check_branch
          %385 = sbr.rel (%p383) target = $region60
        $region59: #{tpu_custom_call.1} parent=51 // pred_region
          %386 = dma.done %s379, 128
        $region60: #{tpu_custom_call.1} parent=51 // pred_fallthru
          _
        %s387 = sand.u32 %s30, 1
        %s388 = scalar_lea.sflag [#allocation7], %s387
        %s389 = sand.u32 %s90, 1
        %s390 = smul.addr %s389, 8
        %s391 = scalar_lea.vmem [#allocation8], %s390
        // Predicated region
        $region61: #{tpu_custom_call.1} parent=51 // pred_check
          %p392 = pneg %p103
        $region62: #{tpu_custom_call.1} parent=51 // pred_check_branch
          %394 = sbr.rel (%p392) target = $region64
        $region63: #{tpu_custom_call.1} parent=51 // pred_region
          %395 = dma.done %s388, 128
        $region64: #{tpu_custom_call.1} parent=51 // pred_fallthru
          _
        // Predicated region
        $region65: #{tpu_custom_call.1} parent=51 // pred_check
          %p396 = pneg %p124
        $region66: #{tpu_custom_call.1} parent=51 // pred_check_branch
          %398 = sbr.rel (%p396) target = $region68
        $region67: #{tpu_custom_call.1} parent=51 // pred_region
          %399 = dma.done [#allocation10], 512
        $region68: #{tpu_custom_call.1} parent=51 // pred_fallthru
          _
        // Predicated region
        $region69: #{tpu_custom_call.1} parent=51 // pred_check
          %p400 = pneg %p145
        $region70: #{tpu_custom_call.1} parent=51 // pred_check_branch
          %402 = sbr.rel (%p400) target = $region72
        $region71: #{tpu_custom_call.1} parent=51 // pred_region
          %403 = dma.done [#allocation10], 512
        $region72: #{tpu_custom_call.1} parent=51 // pred_fallthru
          _
        // Predicated region
        $region73: #{tpu_custom_call.1} parent=51 // pred_check
          %p404 = pneg %p166
        $region74: #{tpu_custom_call.1} parent=51 // pred_check_branch
          %406 = sbr.rel (%p404) target = $region76
        $region75: #{tpu_custom_call.1} parent=51 // pred_region
          %407 = dma.done [#allocation13], 512
        $region76: #{tpu_custom_call.1} parent=51 // pred_fallthru
          _
        // Predicated region
        $region77: #{tpu_custom_call.1} parent=51 // pred_check
          %p408 = pneg %p187
        $region78: #{tpu_custom_call.1} parent=51 // pred_check_branch
          %410 = sbr.rel (%p408) target = $region80
        $region79: #{tpu_custom_call.1} parent=51 // pred_region
          %411 = dma.done [#allocation13], 512
        $region80: #{tpu_custom_call.1} parent=51 // pred_fallthru
          _
        %s412 = sand.u32 %s38, 1
        %s413 = scalar_lea.sflag [#allocation4], %s412
        %s414 = sand.u32 %s38, 1
        %s415 = smul.addr %s414, 8
        %s416 = scalar_lea.vmem [#allocation3], %s415
        %p417 = pneg %p51
        %p418 = pneg %p48
        %s419 = sand.u32 %s30, 1
        %s420 = scalar_lea.sflag [#allocation7], %s419
        %s421 = sand.u32 %s64, 1
        %s422 = smul.addr %s421, 8
        %s423 = scalar_lea.vmem [#allocation6], %s422
        %p424 = pneg %p77
        %p425 = pneg %p74
        %s426 = sand.u32 %s30, 1
        %s427 = scalar_lea.sflag [#allocation7], %s426
        %s428 = sand.u32 %s90, 1
        %s429 = smul.addr %s428, 8
        %s430 = scalar_lea.vmem [#allocation8], %s429
        %p431 = pneg %p103
        %p432 = pneg %p100
        %p433 = pneg %p124
        %p434 = pneg %p121
        %p435 = pneg %p145
        %p436 = pneg %p142
        %p437 = pneg %p166
        %p438 = pneg %p163
        %p439 = pneg %p187
        %p440 = pneg %p184
        %p441 = pneg %p208
        %p442 = pneg %p205
        %p443 = pneg %p234
        %p444 = pneg %p231
        %s445 = sand.u32 %s221, 1
        %s446 = scalar_lea.sflag [#allocation5], %s445
        %s447 = sand.u32 %s221, 1
        %s448 = smul.addr %s447, 8
        %s449 = scalar_lea.vmem [#allocation15], %s448
        %v450 = vld [vmem:[%s373] sm:$0xff]
        %v451 = vld [vmem:[%s382] sm:$0xff]
        %v452 = vld [vmem:[%s391] sm:$0xff]
        %v453 = vld [vmem:[#allocation9] sm:$0xff]
        %v454 = vld [vmem:[#allocation9 + $0x8] sm:$0xff]
        %v455 = vld [vmem:[#allocation9 + $0x10] sm:$0xff]
        %v456 = vld [vmem:[#allocation9 + $0x18] sm:$0xff]
        %vm457 = vcmask 261120
        %v459 = vsel %vm457, %v450, 0
        %461 = vmatprep.subr.mxu0 0.0
        %462 = vmatpush1.msra.mxu0 %v453
        %463 = vmatprep.subr.mxu0 0.0
        %464 = vmatpush1.msra.mxu0 %v454
        %465 = vmatprep.subr.mxu0 0.0
        %466 = vmatpush1.msra.mxu0 %v455
        %467 = vmatprep.subr.mxu0 0.0
        %468 = vmatpush1.msra.mxu0 %v456
        %469 = vmatprep.subr.mxu0 0.0
        %470 = vmatpush1.msra.mxu0 0.0
        %471 = vmatprep.subr.mxu0 0.0
        %472 = vmatpush1.msra.mxu0 0.0
        %473 = vmatprep.subr.mxu0 0.0
        %474 = vmatpush1.msra.mxu0 0.0
        %475 = vmatprep.subr.mxu0 0.0
        %476 = vmatpush1.msra.mxu0 0.0
        %477 = vmatprep.subr.mxu0 0.0
        %478 = vmatpush1.msra.mxu0 0.0
        %479 = vmatprep.subr.mxu0 0.0
        %480 = vmatpush1.msra.mxu0 0.0
        %481 = vmatprep.subr.mxu0 0.0
        %482 = vmatpush1.msra.mxu0 0.0
        %483 = vmatprep.subr.mxu0 0.0
        %484 = vmatpush1.msra.mxu0 0.0
        %485 = vmatprep.subr.mxu0 0.0
        %486 = vmatpush1.msra.mxu0 0.0
        %487 = vmatprep.subr.mxu0 0.0
        %488 = vmatpush1.msra.mxu0 0.0
        %489 = vmatprep.subr.mxu0 0.0
        %490 = vmatpush1.msra.mxu0 0.0
        %491 = vmatprep.subr.mxu0 0.0
        %492 = vmatpush1.msra.mxu0 0.0
        %493 = vmatprep.subr.mxu0 0.0
        %494 = vmatpush1.msra.mxu0 0.0
        %495 = vmatprep.subr.mxu0 0.0
        %496 = vmatpush1.msra.mxu0 0.0
        %497 = vmatprep.subr.mxu0 0.0
        %498 = vmatpush1.msra.mxu0 0.0
        %499 = vmatprep.subr.mxu0 0.0
        %500 = vmatpush1.msra.mxu0 0.0
        %501 = vmatprep.subr.mxu0 0.0
        %502 = vmatpush1.msra.mxu0 0.0
        %503 = vmatprep.subr.mxu0 0.0
        %504 = vmatpush1.msra.mxu0 0.0
        %505 = vmatprep.subr.mxu0 0.0
        %506 = vmatpush1.msra.mxu0 0.0
        %507 = vmatprep.subr.mxu0 0.0
        %508 = vmatpush1.msra.mxu0 0.0
        %509 = vmatprep.subr.mxu0 0.0
        %510 = vmatpush1.msra.mxu0 0.0
        %511 = vmatprep.subr.mxu0 0.0
        %512 = vmatpush1.msra.mxu0 0.0
        %513 = vmatprep.subr.mxu0 0.0
        %514 = vmatpush1.msra.mxu0 0.0
        %515 = vmatprep.subr.mxu0 0.0
        %516 = vmatpush1.msra.mxu0 0.0
        %517 = vmatprep.subr.mxu0 0.0
        %518 = vmatpush1.msra.mxu0 0.0
        %519 = vmatprep.subr.mxu0 0.0
        %520 = vmatpush1.msra.mxu0 0.0
        %521 = vmatprep.subr.mxu0 0.0
        %522 = vmatpush1.msra.mxu0 0.0
        %523 = vmatprep.subr.mxu0 0.0
        %524 = vmatpush1.msra.mxu0 0.0
        %525 = vmatprep.mubr.f32.mxu0 0.0
        %526 = vmatmul.mubr.f32.gmra.mrb[0].mxu0 %v459
        %v527 = vpop.f32.mrb[0].mxu0
        %v528 = vadd.f32 0.0, %v527
        %v529 = vpop.f32.mrb[0].mxu0
        %530 = vdwg.mxu0
        %v531 = vmul.f32 %v528, 0.17677669
        %v532 = vld [vmem:[#allocation11] sm:$0xff]
        %v533 = vld [vmem:[#allocation11 + $0x8] sm:$0xff]
        %v534 = vld [vmem:[#allocation11 + $0x10] sm:$0xff]
        %v535 = vld [vmem:[#allocation11 + $0x18] sm:$0xff]
        %v537 = vsel %vm457, %v451, 0
        %539 = vmatprep.subr.mxu0 0.0
        %540 = vmatpush1.msra.mxu0 %v532
        %541 = vmatprep.subr.mxu0 0.0
        %542 = vmatpush1.msra.mxu0 %v533
        %543 = vmatprep.subr.mxu0 0.0
        %544 = vmatpush1.msra.mxu0 %v534
        %545 = vmatprep.subr.mxu0 0.0
        %546 = vmatpush1.msra.mxu0 %v535
        %547 = vmatprep.subr.mxu0 0.0
        %548 = vmatpush1.msra.mxu0 0.0
        %549 = vmatprep.subr.mxu0 0.0
        %550 = vmatpush1.msra.mxu0 0.0
        %551 = vmatprep.subr.mxu0 0.0
        %552 = vmatpush1.msra.mxu0 0.0
        %553 = vmatprep.subr.mxu0 0.0
        %554 = vmatpush1.msra.mxu0 0.0
        %555 = vmatprep.subr.mxu0 0.0
        %556 = vmatpush1.msra.mxu0 0.0
        %557 = vmatprep.subr.mxu0 0.0
        %558 = vmatpush1.msra.mxu0 0.0
        %559 = vmatprep.subr.mxu0 0.0
        %560 = vmatpush1.msra.mxu0 0.0
        %561 = vmatprep.subr.mxu0 0.0
        %562 = vmatpush1.msra.mxu0 0.0
        %563 = vmatprep.subr.mxu0 0.0
        %564 = vmatpush1.msra.mxu0 0.0
        %565 = vmatprep.subr.mxu0 0.0
        %566 = vmatpush1.msra.mxu0 0.0
        %567 = vmatprep.subr.mxu0 0.0
        %568 = vmatpush1.msra.mxu0 0.0
        %569 = vmatprep.subr.mxu0 0.0
        %570 = vmatpush1.msra.mxu0 0.0
        %571 = vmatprep.subr.mxu0 0.0
        %572 = vmatpush1.msra.mxu0 0.0
        %573 = vmatprep.subr.mxu0 0.0
        %574 = vmatpush1.msra.mxu0 0.0
        %575 = vmatprep.subr.mxu0 0.0
        %576 = vmatpush1.msra.mxu0 0.0
        %577 = vmatprep.subr.mxu0 0.0
        %578 = vmatpush1.msra.mxu0 0.0
        %579 = vmatprep.subr.mxu0 0.0
        %580 = vmatpush1.msra.mxu0 0.0
        %581 = vmatprep.subr.mxu0 0.0
        %582 = vmatpush1.msra.mxu0 0.0
        %583 = vmatprep.subr.mxu0 0.0
        %584 = vmatpush1.msra.mxu0 0.0
        %585 = vmatprep.subr.mxu0 0.0
        %586 = vmatpush1.msra.mxu0 0.0
        %587 = vmatprep.subr.mxu0 0.0
        %588 = vmatpush1.msra.mxu0 0.0
        %589 = vmatprep.subr.mxu0 0.0
        %590 = vmatpush1.msra.mxu0 0.0
        %591 = vmatprep.subr.mxu0 0.0
        %592 = vmatpush1.msra.mxu0 0.0
        %593 = vmatprep.subr.mxu0 0.0
        %594 = vmatpush1.msra.mxu0 0.0
        %595 = vmatprep.subr.mxu0 0.0
        %596 = vmatpush1.msra.mxu0 0.0
        %597 = vmatprep.subr.mxu0 0.0
        %598 = vmatpush1.msra.mxu0 0.0
        %599 = vmatprep.subr.mxu0 0.0
        %600 = vmatpush1.msra.mxu0 0.0
        %601 = vmatprep.subr.mxu0 0.0
        %602 = vmatpush1.msra.mxu0 0.0
        %603 = vmatprep.mubr.f32.mxu0 0.0
        %604 = vmatmul.mubr.f32.gmra.mrb[0].mxu0 %v537
        %v605 = vpop.f32.mrb[0].mxu0
        %v606 = vadd.f32 0.0, %v605
        %v607 = vpop.f32.mrb[0].mxu0
        %608 = vdwg.mxu0
        %v609 = vld [vmem:[#allocation12] sm:$0xff]
        %v610 = vld [vmem:[#allocation12 + $0x8] sm:$0xff]
        %v611 = vld [vmem:[#allocation12 + $0x10] sm:$0xff]
        %v612 = vld [vmem:[#allocation12 + $0x18] sm:$0xff]
        %v614 = vsel %vm457, %v452, 0
        %616 = vmatprep.subr.mxu0 0.0
        %617 = vmatpush1.msra.mxu0 %v609
        %618 = vmatprep.subr.mxu0 0.0
        %619 = vmatpush1.msra.mxu0 %v610
        %620 = vmatprep.subr.mxu0 0.0
        %621 = vmatpush1.msra.mxu0 %v611
        %622 = vmatprep.subr.mxu0 0.0
        %623 = vmatpush1.msra.mxu0 %v612
        %624 = vmatprep.subr.mxu0 0.0
        %625 = vmatpush1.msra.mxu0 0.0
        %626 = vmatprep.subr.mxu0 0.0
        %627 = vmatpush1.msra.mxu0 0.0
        %628 = vmatprep.subr.mxu0 0.0
        %629 = vmatpush1.msra.mxu0 0.0
        %630 = vmatprep.subr.mxu0 0.0
        %631 = vmatpush1.msra.mxu0 0.0
        %632 = vmatprep.subr.mxu0 0.0
        %633 = vmatpush1.msra.mxu0 0.0
        %634 = vmatprep.subr.mxu0 0.0
        %635 = vmatpush1.msra.mxu0 0.0
        %636 = vmatprep.subr.mxu0 0.0
        %637 = vmatpush1.msra.mxu0 0.0
        %638 = vmatprep.subr.mxu0 0.0
        %639 = vmatpush1.msra.mxu0 0.0
        %640 = vmatprep.subr.mxu0 0.0
        %641 = vmatpush1.msra.mxu0 0.0
        %642 = vmatprep.subr.mxu0 0.0
        %643 = vmatpush1.msra.mxu0 0.0
        %644 = vmatprep.subr.mxu0 0.0
        %645 = vmatpush1.msra.mxu0 0.0
        %646 = vmatprep.subr.mxu0 0.0
        %647 = vmatpush1.msra.mxu0 0.0
        %648 = vmatprep.subr.mxu0 0.0
        %649 = vmatpush1.msra.mxu0 0.0
        %650 = vmatprep.subr.mxu0 0.0
        %651 = vmatpush1.msra.mxu0 0.0
        %652 = vmatprep.subr.mxu0 0.0
        %653 = vmatpush1.msra.mxu0 0.0
        %654 = vmatprep.subr.mxu0 0.0
        %655 = vmatpush1.msra.mxu0 0.0
        %656 = vmatprep.subr.mxu0 0.0
        %657 = vmatpush1.msra.mxu0 0.0
        %658 = vmatprep.subr.mxu0 0.0
        %659 = vmatpush1.msra.mxu0 0.0
        %660 = vmatprep.subr.mxu0 0.0
        %661 = vmatpush1.msra.mxu0 0.0
        %662 = vmatprep.subr.mxu0 0.0
        %663 = vmatpush1.msra.mxu0 0.0
        %664 = vmatprep.subr.mxu0 0.0
        %665 = vmatpush1.msra.mxu0 0.0
        %666 = vmatprep.subr.mxu0 0.0
        %667 = vmatpush1.msra.mxu0 0.0
        %668 = vmatprep.subr.mxu0 0.0
        %669 = vmatpush1.msra.mxu0 0.0
        %670 = vmatprep.subr.mxu0 0.0
        %671 = vmatpush1.msra.mxu0 0.0
        %672 = vmatprep.subr.mxu0 0.0
        %673 = vmatpush1.msra.mxu0 0.0
        %674 = vmatprep.subr.mxu0 0.0
        %675 = vmatpush1.msra.mxu0 0.0
        %676 = vmatprep.subr.mxu0 0.0
        %677 = vmatpush1.msra.mxu0 0.0
        %678 = vmatprep.subr.mxu0 0.0
        %679 = vmatpush1.msra.mxu0 0.0
        %680 = vmatprep.mubr.f32.mxu0 0.0
        %681 = vmatmul.mubr.f32.gmra.mrb[0].mxu0 %v614
        %v682 = vpop.f32.mrb[0].mxu0
        %v683 = vadd.f32 0.0, %v682
        %v684 = vpop.f32.mrb[0].mxu0
        %685 = vdwg.mxu0
        %vm686 = vcmask 64512
        %v688 = vsel %vm686, %v531, 0
        %v691 = vsel %vm686, %v606, 0
        %693 = vmatprep.subr.mxu0 0.0
        %694 = vmatpush1.xpose.msra.mxu0 %v691
        %695 = vmatprep.subr.mxu0 0.0
        %696 = vmatpush1.xpose.msra.mxu0 0.0
        %697 = vmatprep.subr.mxu0 0.0
        %698 = vmatpush1.xpose.msra.mxu0 0.0
        %699 = vmatprep.subr.mxu0 0.0
        %700 = vmatpush1.xpose.msra.mxu0 0.0
        %701 = vmatprep.subr.mxu0 0.0
        %702 = vmatpush1.xpose.msra.mxu0 0.0
        %703 = vmatprep.subr.mxu0 0.0
        %704 = vmatpush1.xpose.msra.mxu0 0.0
        %705 = vmatprep.subr.mxu0 0.0
        %706 = vmatpush1.xpose.msra.mxu0 0.0
        %707 = vmatprep.subr.mxu0 0.0
        %708 = vmatpush1.xpose.msra.mxu0 0.0
        %709 = vmatprep.subr.mxu0 0.0
        %710 = vmatpush1.xpose.msra.mxu0 0.0
        %711 = vmatprep.subr.mxu0 0.0
        %712 = vmatpush1.xpose.msra.mxu0 0.0
        %713 = vmatprep.subr.mxu0 0.0
        %714 = vmatpush1.xpose.msra.mxu0 0.0
        %715 = vmatprep.subr.mxu0 0.0
        %716 = vmatpush1.xpose.msra.mxu0 0.0
        %717 = vmatprep.subr.mxu0 0.0
        %718 = vmatpush1.xpose.msra.mxu0 0.0
        %719 = vmatprep.subr.mxu0 0.0
        %720 = vmatpush1.xpose.msra.mxu0 0.0
        %721 = vmatprep.subr.mxu0 0.0
        %722 = vmatpush1.xpose.msra.mxu0 0.0
        %723 = vmatprep.subr.mxu0 0.0
        %724 = vmatpush1.xpose.msra.mxu0 0.0
        %725 = vmatprep.subr.mxu0 0.0
        %726 = vmatpush1.xpose.msra.mxu0 0.0
        %727 = vmatprep.subr.mxu0 0.0
        %728 = vmatpush1.xpose.msra.mxu0 0.0
        %729 = vmatprep.subr.mxu0 0.0
        %730 = vmatpush1.xpose.msra.mxu0 0.0
        %731 = vmatprep.subr.mxu0 0.0
        %732 = vmatpush1.xpose.msra.mxu0 0.0
        %733 = vmatprep.subr.mxu0 0.0
        %734 = vmatpush1.xpose.msra.mxu0 0.0
        %735 = vmatprep.subr.mxu0 0.0
        %736 = vmatpush1.xpose.msra.mxu0 0.0
        %737 = vmatprep.subr.mxu0 0.0
        %738 = vmatpush1.xpose.msra.mxu0 0.0
        %739 = vmatprep.subr.mxu0 0.0
        %740 = vmatpush1.xpose.msra.mxu0 0.0
        %741 = vmatprep.subr.mxu0 0.0
        %742 = vmatpush1.xpose.msra.mxu0 0.0
        %743 = vmatprep.subr.mxu0 0.0
        %744 = vmatpush1.xpose.msra.mxu0 0.0
        %745 = vmatprep.subr.mxu0 0.0
        %746 = vmatpush1.xpose.msra.mxu0 0.0
        %747 = vmatprep.subr.mxu0 0.0
        %748 = vmatpush1.xpose.msra.mxu0 0.0
        %749 = vmatprep.subr.mxu0 0.0
        %750 = vmatpush1.xpose.msra.mxu0 0.0
        %751 = vmatprep.subr.mxu0 0.0
        %752 = vmatpush1.xpose.msra.mxu0 0.0
        %753 = vmatprep.subr.mxu0 0.0
        %754 = vmatpush1.xpose.msra.mxu0 0.0
        %755 = vmatprep.subr.mxu0 0.0
        %756 = vmatpush1.xpose.msra.mxu0 0.0
        %757 = vmatprep.mubr.f32.mxu0 0.0
        %758 = vmatmul.mubr.f32.gmra.mrb[0].mxu0 %v688
        %v759 = vpop.f32.mrb[0].mxu0
        %v760 = vadd.f32 0.0, %v759
        %v761 = vpop.f32.mrb[0].mxu0
        %762 = vdwg.mxu0
        %v763 = vsel %vm686, %v760, -inf
        %764 = vmax.xlane.f32.xlu0 %v763
        %v765 = vpop.xlane.xlu0 %764
        %v766 = vsub.f32 %v760, %v765
        %v767 = vmul.f32 %v766, 1.442695
        %v768 = vpow.pop %v767
        %v769 = vsel %vm686, %v768, 0.0
        %770 = vadd.xlane.f32.xlu0 %v769
        %v771 = vpop.xlane.xlu0 %770
        %v772 = vrcp.pop %v771
        %v773 = vmul.f32 %v768, %v772
        %v775 = vsel %vm686, %v773, 0
        %777 = vmatprep.subr.mxu0 0.0
        %778 = vmatpush1.msra.mxu0 %v683
        %779 = vmatprep.subr.mxu0 0.0
        %780 = vmatpush1.msra.mxu0 0.0
        %781 = vmatprep.subr.mxu0 0.0
        %782 = vmatpush1.msra.mxu0 0.0
        %783 = vmatprep.subr.mxu0 0.0
        %784 = vmatpush1.msra.mxu0 0.0
        %785 = vmatprep.subr.mxu0 0.0
        %786 = vmatpush1.msra.mxu0 0.0
        %787 = vmatprep.subr.mxu0 0.0
        %788 = vmatpush1.msra.mxu0 0.0
        %789 = vmatprep.subr.mxu0 0.0
        %790 = vmatpush1.msra.mxu0 0.0
        %791 = vmatprep.subr.mxu0 0.0
        %792 = vmatpush1.msra.mxu0 0.0
        %793 = vmatprep.subr.mxu0 0.0
        %794 = vmatpush1.msra.mxu0 0.0
        %795 = vmatprep.subr.mxu0 0.0
        %796 = vmatpush1.msra.mxu0 0.0
        %797 = vmatprep.subr.mxu0 0.0
        %798 = vmatpush1.msra.mxu0 0.0
        %799 = vmatprep.subr.mxu0 0.0
        %800 = vmatpush1.msra.mxu0 0.0
        %801 = vmatprep.subr.mxu0 0.0
        %802 = vmatpush1.msra.mxu0 0.0
        %803 = vmatprep.subr.mxu0 0.0
        %804 = vmatpush1.msra.mxu0 0.0
        %805 = vmatprep.subr.mxu0 0.0
        %806 = vmatpush1.msra.mxu0 0.0
        %807 = vmatprep.subr.mxu0 0.0
        %808 = vmatpush1.msra.mxu0 0.0
        %809 = vmatprep.subr.mxu0 0.0
        %810 = vmatpush1.msra.mxu0 0.0
        %811 = vmatprep.subr.mxu0 0.0
        %812 = vmatpush1.msra.mxu0 0.0
        %813 = vmatprep.subr.mxu0 0.0
        %814 = vmatpush1.msra.mxu0 0.0
        %815 = vmatprep.subr.mxu0 0.0
        %816 = vmatpush1.msra.mxu0 0.0
        %817 = vmatprep.subr.mxu0 0.0
        %818 = vmatpush1.msra.mxu0 0.0
        %819 = vmatprep.subr.mxu0 0.0
        %820 = vmatpush1.msra.mxu0 0.0
        %821 = vmatprep.subr.mxu0 0.0
        %822 = vmatpush1.msra.mxu0 0.0
        %823 = vmatprep.subr.mxu0 0.0
        %824 = vmatpush1.msra.mxu0 0.0
        %825 = vmatprep.subr.mxu0 0.0
        %826 = vmatpush1.msra.mxu0 0.0
        %827 = vmatprep.subr.mxu0 0.0
        %828 = vmatpush1.msra.mxu0 0.0
        %829 = vmatprep.subr.mxu0 0.0
        %830 = vmatpush1.msra.mxu0 0.0
        %831 = vmatprep.subr.mxu0 0.0
        %832 = vmatpush1.msra.mxu0 0.0
        %833 = vmatprep.subr.mxu0 0.0
        %834 = vmatpush1.msra.mxu0 0.0
        %835 = vmatprep.subr.mxu0 0.0
        %836 = vmatpush1.msra.mxu0 0.0
        %837 = vmatprep.subr.mxu0 0.0
        %838 = vmatpush1.msra.mxu0 0.0
        %839 = vmatprep.subr.mxu0 0.0
        %840 = vmatpush1.msra.mxu0 0.0
        %841 = vmatprep.mubr.f32.mxu0 0.0
        %842 = vmatmul.mubr.f32.gmra.mrb[0].mxu0 %v775
        %v843 = vpop.f32.mrb[0].mxu0
        %v844 = vadd.f32 0.0, %v843
        %v845 = vpop.f32.mrb[0].mxu0
        %846 = vdwg.mxu0
        %847 = vst.msk [vmem:[#allocation2] sm:$0xff] %vm686, %v844
        %848 = vrot.lane.b32.xlu0 %v531, 120
        %v849 = vpop.permute.xlu0 %848
        %850 = vrot.lane.b32.xlu0 %v606, 120
        %v851 = vpop.permute.xlu0 %850
        %v852 = vsel %vm686, %v849, 0
        %v854 = vsel %vm686, %v851, 0
        %856 = vmatprep.subr.mxu0 0.0
        %857 = vmatpush1.xpose.msra.mxu0 %v854
        %858 = vmatprep.subr.mxu0 0.0
        %859 = vmatpush1.xpose.msra.mxu0 0.0
        %860 = vmatprep.subr.mxu0 0.0
        %861 = vmatpush1.xpose.msra.mxu0 0.0
        %862 = vmatprep.subr.mxu0 0.0
        %863 = vmatpush1.xpose.msra.mxu0 0.0
        %864 = vmatprep.subr.mxu0 0.0
        %865 = vmatpush1.xpose.msra.mxu0 0.0
        %866 = vmatprep.subr.mxu0 0.0
        %867 = vmatpush1.xpose.msra.mxu0 0.0
        %868 = vmatprep.subr.mxu0 0.0
        %869 = vmatpush1.xpose.msra.mxu0 0.0
        %870 = vmatprep.subr.mxu0 0.0
        %871 = vmatpush1.xpose.msra.mxu0 0.0
        %872 = vmatprep.subr.mxu0 0.0
        %873 = vmatpush1.xpose.msra.mxu0 0.0
        %874 = vmatprep.subr.mxu0 0.0
        %875 = vmatpush1.xpose.msra.mxu0 0.0
        %876 = vmatprep.subr.mxu0 0.0
        %877 = vmatpush1.xpose.msra.mxu0 0.0
        %878 = vmatprep.subr.mxu0 0.0
        %879 = vmatpush1.xpose.msra.mxu0 0.0
        %880 = vmatprep.subr.mxu0 0.0
        %881 = vmatpush1.xpose.msra.mxu0 0.0
        %882 = vmatprep.subr.mxu0 0.0
        %883 = vmatpush1.xpose.msra.mxu0 0.0
        %884 = vmatprep.subr.mxu0 0.0
        %885 = vmatpush1.xpose.msra.mxu0 0.0
        %886 = vmatprep.subr.mxu0 0.0
        %887 = vmatpush1.xpose.msra.mxu0 0.0
        %888 = vmatprep.subr.mxu0 0.0
        %889 = vmatpush1.xpose.msra.mxu0 0.0
        %890 = vmatprep.subr.mxu0 0.0
        %891 = vmatpush1.xpose.msra.mxu0 0.0
        %892 = vmatprep.subr.mxu0 0.0
        %893 = vmatpush1.xpose.msra.mxu0 0.0
        %894 = vmatprep.subr.mxu0 0.0
        %895 = vmatpush1.xpose.msra.mxu0 0.0
        %896 = vmatprep.subr.mxu0 0.0
        %897 = vmatpush1.xpose.msra.mxu0 0.0
        %898 = vmatprep.subr.mxu0 0.0
        %899 = vmatpush1.xpose.msra.mxu0 0.0
        %900 = vmatprep.subr.mxu0 0.0
        %901 = vmatpush1.xpose.msra.mxu0 0.0
        %902 = vmatprep.subr.mxu0 0.0
        %903 = vmatpush1.xpose.msra.mxu0 0.0
        %904 = vmatprep.subr.mxu0 0.0
        %905 = vmatpush1.xpose.msra.mxu0 0.0
        %906 = vmatprep.subr.mxu0 0.0
        %907 = vmatpush1.xpose.msra.mxu0 0.0
        %908 = vmatprep.subr.mxu0 0.0
        %909 = vmatpush1.xpose.msra.mxu0 0.0
        %910 = vmatprep.subr.mxu0 0.0
        %911 = vmatpush1.xpose.msra.mxu0 0.0
        %912 = vmatprep.subr.mxu0 0.0
        %913 = vmatpush1.xpose.msra.mxu0 0.0
        %914 = vmatprep.subr.mxu0 0.0
        %915 = vmatpush1.xpose.msra.mxu0 0.0
        %916 = vmatprep.subr.mxu0 0.0
        %917 = vmatpush1.xpose.msra.mxu0 0.0
        %918 = vmatprep.subr.mxu0 0.0
        %919 = vmatpush1.xpose.msra.mxu0 0.0
        %920 = vmatprep.mubr.f32.mxu0 0.0
        %921 = vmatmul.mubr.f32.gmra.mrb[0].mxu0 %v852
        %v922 = vpop.f32.mrb[0].mxu0
        %v923 = vadd.f32 0.0, %v922
        %v924 = vpop.f32.mrb[0].mxu0
        %925 = vdwg.mxu0
        %v926 = vsel %vm686, %v923, -inf
        %927 = vmax.xlane.f32.xlu0 %v926
        %v928 = vpop.xlane.xlu0 %927
        %v929 = vsub.f32 %v923, %v928
        %v930 = vmul.f32 %v929, 1.442695
        %v931 = vpow.pop %v930
        %v932 = vsel %vm686, %v931, 0.0
        %933 = vadd.xlane.f32.xlu0 %v932
        %v934 = vpop.xlane.xlu0 %933
        %v935 = vrcp.pop %v934
        %v936 = vmul.f32 %v931, %v935
        %938 = vrot.lane.b32.xlu0 %v683, 120
        %v939 = vpop.permute.xlu0 %938
        %v942 = vsel %vm686, %v936, 0
        %944 = vmatprep.subr.mxu0 0.0
        %945 = vmatpush1.msra.mxu0 %v939
        %946 = vmatprep.subr.mxu0 0.0
        %947 = vmatpush1.msra.mxu0 0.0
        %948 = vmatprep.subr.mxu0 0.0
        %949 = vmatpush1.msra.mxu0 0.0
        %950 = vmatprep.subr.mxu0 0.0
        %951 = vmatpush1.msra.mxu0 0.0
        %952 = vmatprep.subr.mxu0 0.0
        %953 = vmatpush1.msra.mxu0 0.0
        %954 = vmatprep.subr.mxu0 0.0
        %955 = vmatpush1.msra.mxu0 0.0
        %956 = vmatprep.subr.mxu0 0.0
        %957 = vmatpush1.msra.mxu0 0.0
        %958 = vmatprep.subr.mxu0 0.0
        %959 = vmatpush1.msra.mxu0 0.0
        %960 = vmatprep.subr.mxu0 0.0
        %961 = vmatpush1.msra.mxu0 0.0
        %962 = vmatprep.subr.mxu0 0.0
        %963 = vmatpush1.msra.mxu0 0.0
        %964 = vmatprep.subr.mxu0 0.0
        %965 = vmatpush1.msra.mxu0 0.0
        %966 = vmatprep.subr.mxu0 0.0
        %967 = vmatpush1.msra.mxu0 0.0
        %968 = vmatprep.subr.mxu0 0.0
        %969 = vmatpush1.msra.mxu0 0.0
        %970 = vmatprep.subr.mxu0 0.0
        %971 = vmatpush1.msra.mxu0 0.0
        %972 = vmatprep.subr.mxu0 0.0
        %973 = vmatpush1.msra.mxu0 0.0
        %974 = vmatprep.subr.mxu0 0.0
        %975 = vmatpush1.msra.mxu0 0.0
        %976 = vmatprep.subr.mxu0 0.0
        %977 = vmatpush1.msra.mxu0 0.0
        %978 = vmatprep.subr.mxu0 0.0
        %979 = vmatpush1.msra.mxu0 0.0
        %980 = vmatprep.subr.mxu0 0.0
        %981 = vmatpush1.msra.mxu0 0.0
        %982 = vmatprep.subr.mxu0 0.0
        %983 = vmatpush1.msra.mxu0 0.0
        %984 = vmatprep.subr.mxu0 0.0
        %985 = vmatpush1.msra.mxu0 0.0
        %986 = vmatprep.subr.mxu0 0.0
        %987 = vmatpush1.msra.mxu0 0.0
        %988 = vmatprep.subr.mxu0 0.0
        %989 = vmatpush1.msra.mxu0 0.0
        %990 = vmatprep.subr.mxu0 0.0
        %991 = vmatpush1.msra.mxu0 0.0
        %992 = vmatprep.subr.mxu0 0.0
        %993 = vmatpush1.msra.mxu0 0.0
        %994 = vmatprep.subr.mxu0 0.0
        %995 = vmatpush1.msra.mxu0 0.0
        %996 = vmatprep.subr.mxu0 0.0
        %997 = vmatpush1.msra.mxu0 0.0
        %998 = vmatprep.subr.mxu0 0.0
        %999 = vmatpush1.msra.mxu0 0.0
        %1000 = vmatprep.subr.mxu0 0.0
        %1001 = vmatpush1.msra.mxu0 0.0
        %1002 = vmatprep.subr.mxu0 0.0
        %1003 = vmatpush1.msra.mxu0 0.0
        %1004 = vmatprep.subr.mxu0 0.0
        %1005 = vmatpush1.msra.mxu0 0.0
        %1006 = vmatprep.subr.mxu0 0.0
        %1007 = vmatpush1.msra.mxu0 0.0
        %1008 = vmatprep.mubr.f32.mxu0 0.0
        %1009 = vmatmul.mubr.f32.gmra.mrb[0].mxu0 %v942
        %v1010 = vpop.f32.mrb[0].mxu0
        %v1011 = vadd.f32 0.0, %v1010
        %v1012 = vpop.f32.mrb[0].mxu0
        %1013 = vdwg.mxu0
        %1015 = vrot.lane.b32.xlu0 %v1011, 8
        %v1016 = vpop.permute.xlu0 %1015
        %vm1018 = vcmask 130112
        %1019 = vst.msk [vmem:[#allocation2] sm:$0xff] %vm1018, %v1016
        %1020 = vrot.lane.b32.xlu0 %v531, 112
        %v1021 = vpop.permute.xlu0 %1020
        %1022 = vrot.lane.b32.xlu0 %v606, 112
        %v1023 = vpop.permute.xlu0 %1022
        %v1024 = vsel %vm686, %v1021, 0
        %v1026 = vsel %vm686, %v1023, 0
        %1028 = vmatprep.subr.mxu0 0.0
        %1029 = vmatpush1.xpose.msra.mxu0 %v1026
        %1030 = vmatprep.subr.mxu0 0.0
        %1031 = vmatpush1.xpose.msra.mxu0 0.0
        %1032 = vmatprep.subr.mxu0 0.0
        %1033 = vmatpush1.xpose.msra.mxu0 0.0
        %1034 = vmatprep.subr.mxu0 0.0
        %1035 = vmatpush1.xpose.msra.mxu0 0.0
        %1036 = vmatprep.subr.mxu0 0.0
        %1037 = vmatpush1.xpose.msra.mxu0 0.0
        %1038 = vmatprep.subr.mxu0 0.0
        %1039 = vmatpush1.xpose.msra.mxu0 0.0
        %1040 = vmatprep.subr.mxu0 0.0
        %1041 = vmatpush1.xpose.msra.mxu0 0.0
        %1042 = vmatprep.subr.mxu0 0.0
        %1043 = vmatpush1.xpose.msra.mxu0 0.0
        %1044 = vmatprep.subr.mxu0 0.0
        %1045 = vmatpush1.xpose.msra.mxu0 0.0
        %1046 = vmatprep.subr.mxu0 0.0
        %1047 = vmatpush1.xpose.msra.mxu0 0.0
        %1048 = vmatprep.subr.mxu0 0.0
        %1049 = vmatpush1.xpose.msra.mxu0 0.0
        %1050 = vmatprep.subr.mxu0 0.0
        %1051 = vmatpush1.xpose.msra.mxu0 0.0
        %1052 = vmatprep.subr.mxu0 0.0
        %1053 = vmatpush1.xpose.msra.mxu0 0.0
        %1054 = vmatprep.subr.mxu0 0.0
        %1055 = vmatpush1.xpose.msra.mxu0 0.0
        %1056 = vmatprep.subr.mxu0 0.0
        %1057 = vmatpush1.xpose.msra.mxu0 0.0
        %1058 = vmatprep.subr.mxu0 0.0
        %1059 = vmatpush1.xpose.msra.mxu0 0.0
        %1060 = vmatprep.subr.mxu0 0.0
        %1061 = vmatpush1.xpose.msra.mxu0 0.0
        %1062 = vmatprep.subr.mxu0 0.0
        %1063 = vmatpush1.xpose.msra.mxu0 0.0
        %1064 = vmatprep.subr.mxu0 0.0
        %1065 = vmatpush1.xpose.msra.mxu0 0.0
        %1066 = vmatprep.subr.mxu0 0.0
        %1067 = vmatpush1.xpose.msra.mxu0 0.0
        %1068 = vmatprep.subr.mxu0 0.0
        %1069 = vmatpush1.xpose.msra.mxu0 0.0
        %1070 = vmatprep.subr.mxu0 0.0
        %1071 = vmatpush1.xpose.msra.mxu0 0.0
        %1072 = vmatprep.subr.mxu0 0.0
        %1073 = vmatpush1.xpose.msra.mxu0 0.0
        %1074 = vmatprep.subr.mxu0 0.0
        %1075 = vmatpush1.xpose.msra.mxu0 0.0
        %1076 = vmatprep.subr.mxu0 0.0
        %1077 = vmatpush1.xpose.msra.mxu0 0.0
        %1078 = vmatprep.subr.mxu0 0.0
        %1079 = vmatpush1.xpose.msra.mxu0 0.0
        %1080 = vmatprep.subr.mxu0 0.0
        %1081 = vmatpush1.xpose.msra.mxu0 0.0
        %1082 = vmatprep.subr.mxu0 0.0
        %1083 = vmatpush1.xpose.msra.mxu0 0.0
        %1084 = vmatprep.subr.mxu0 0.0
        %1085 = vmatpush1.xpose.msra.mxu0 0.0
        %1086 = vmatprep.subr.mxu0 0.0
        %1087 = vmatpush1.xpose.msra.mxu0 0.0
        %1088 = vmatprep.subr.mxu0 0.0
        %1089 = vmatpush1.xpose.msra.mxu0 0.0
        %1090 = vmatprep.subr.mxu0 0.0
        %1091 = vmatpush1.xpose.msra.mxu0 0.0
        %1092 = vmatprep.mubr.f32.mxu0 0.0
        %1093 = vmatmul.mubr.f32.gmra.mrb[0].mxu0 %v1024
        %v1094 = vpop.f32.mrb[0].mxu0
        %v1095 = vadd.f32 0.0, %v1094
        %v1096 = vpop.f32.mrb[0].mxu0
        %1097 = vdwg.mxu0
        %v1098 = vsel %vm686, %v1095, -inf
        %1099 = vmax.xlane.f32.xlu0 %v1098
        %v1100 = vpop.xlane.xlu0 %1099
        %v1101 = vsub.f32 %v1095, %v1100
        %v1102 = vmul.f32 %v1101, 1.442695
        %v1103 = vpow.pop %v1102
        %v1104 = vsel %vm686, %v1103, 0.0
        %1105 = vadd.xlane.f32.xlu0 %v1104
        %v1106 = vpop.xlane.xlu0 %1105
        %v1107 = vrcp.pop %v1106
        %v1108 = vmul.f32 %v1103, %v1107
        %1109 = vrot.lane.b32.xlu0 %v683, 112
        %v1110 = vpop.permute.xlu0 %1109
        %v1113 = vsel %vm686, %v1108, 0
        %1115 = vmatprep.subr.mxu0 0.0
        %1116 = vmatpush1.msra.mxu0 %v1110
        %1117 = vmatprep.subr.mxu0 0.0
        %1118 = vmatpush1.msra.mxu0 0.0
        %1119 = vmatprep.subr.mxu0 0.0
        %1120 = vmatpush1.msra.mxu0 0.0
        %1121 = vmatprep.subr.mxu0 0.0
        %1122 = vmatpush1.msra.mxu0 0.0
        %1123 = vmatprep.subr.mxu0 0.0
        %1124 = vmatpush1.msra.mxu0 0.0
        %1125 = vmatprep.subr.mxu0 0.0
        %1126 = vmatpush1.msra.mxu0 0.0
        %1127 = vmatprep.subr.mxu0 0.0
        %1128 = vmatpush1.msra.mxu0 0.0
        %1129 = vmatprep.subr.mxu0 0.0
        %1130 = vmatpush1.msra.mxu0 0.0
        %1131 = vmatprep.subr.mxu0 0.0
        %1132 = vmatpush1.msra.mxu0 0.0
        %1133 = vmatprep.subr.mxu0 0.0
        %1134 = vmatpush1.msra.mxu0 0.0
        %1135 = vmatprep.subr.mxu0 0.0
        %1136 = vmatpush1.msra.mxu0 0.0
        %1137 = vmatprep.subr.mxu0 0.0
        %1138 = vmatpush1.msra.mxu0 0.0
        %1139 = vmatprep.subr.mxu0 0.0
        %1140 = vmatpush1.msra.mxu0 0.0
        %1141 = vmatprep.subr.mxu0 0.0
        %1142 = vmatpush1.msra.mxu0 0.0
        %1143 = vmatprep.subr.mxu0 0.0
        %1144 = vmatpush1.msra.mxu0 0.0
        %1145 = vmatprep.subr.mxu0 0.0
        %1146 = vmatpush1.msra.mxu0 0.0
        %1147 = vmatprep.subr.mxu0 0.0
        %1148 = vmatpush1.msra.mxu0 0.0
        %1149 = vmatprep.subr.mxu0 0.0
        %1150 = vmatpush1.msra.mxu0 0.0
        %1151 = vmatprep.subr.mxu0 0.0
        %1152 = vmatpush1.msra.mxu0 0.0
        %1153 = vmatprep.subr.mxu0 0.0
        %1154 = vmatpush1.msra.mxu0 0.0
        %1155 = vmatprep.subr.mxu0 0.0
        %1156 = vmatpush1.msra.mxu0 0.0
        %1157 = vmatprep.subr.mxu0 0.0
        %1158 = vmatpush1.msra.mxu0 0.0
        %1159 = vmatprep.subr.mxu0 0.0
        %1160 = vmatpush1.msra.mxu0 0.0
        %1161 = vmatprep.subr.mxu0 0.0
        %1162 = vmatpush1.msra.mxu0 0.0
        %1163 = vmatprep.subr.mxu0 0.0
        %1164 = vmatpush1.msra.mxu0 0.0
        %1165 = vmatprep.subr.mxu0 0.0
        %1166 = vmatpush1.msra.mxu0 0.0
        %1167 = vmatprep.subr.mxu0 0.0
        %1168 = vmatpush1.msra.mxu0 0.0
        %1169 = vmatprep.subr.mxu0 0.0
        %1170 = vmatpush1.msra.mxu0 0.0
        %1171 = vmatprep.subr.mxu0 0.0
        %1172 = vmatpush1.msra.mxu0 0.0
        %1173 = vmatprep.subr.mxu0 0.0
        %1174 = vmatpush1.msra.mxu0 0.0
        %1175 = vmatprep.subr.mxu0 0.0
        %1176 = vmatpush1.msra.mxu0 0.0
        %1177 = vmatprep.subr.mxu0 0.0
        %1178 = vmatpush1.msra.mxu0 0.0
        %1179 = vmatprep.mubr.f32.mxu0 0.0
        %1180 = vmatmul.mubr.f32.gmra.mrb[0].mxu0 %v1113
        %v1181 = vpop.f32.mrb[0].mxu0
        %v1182 = vadd.f32 0.0, %v1181
        %v1183 = vpop.f32.mrb[0].mxu0
        %1184 = vdwg.mxu0
        %1186 = vrot.lane.b32.xlu0 %v1182, 16
        %v1187 = vpop.permute.xlu0 %1186
        %vm1189 = vcmask 195712
        %1190 = vst.msk [vmem:[#allocation2] sm:$0xff] %vm1189, %v1187
        %1191 = vrot.lane.b32.xlu0 %v531, 104
        %v1192 = vpop.permute.xlu0 %1191
        %1193 = vrot.lane.b32.xlu0 %v606, 104
        %v1194 = vpop.permute.xlu0 %1193
        %v1195 = vsel %vm686, %v1192, 0
        %v1197 = vsel %vm686, %v1194, 0
        %1199 = vmatprep.subr.mxu0 0.0
        %1200 = vmatpush1.xpose.msra.mxu0 %v1197
        %1201 = vmatprep.subr.mxu0 0.0
        %1202 = vmatpush1.xpose.msra.mxu0 0.0
        %1203 = vmatprep.subr.mxu0 0.0
        %1204 = vmatpush1.xpose.msra.mxu0 0.0
        %1205 = vmatprep.subr.mxu0 0.0
        %1206 = vmatpush1.xpose.msra.mxu0 0.0
        %1207 = vmatprep.subr.mxu0 0.0
        %1208 = vmatpush1.xpose.msra.mxu0 0.0
        %1209 = vmatprep.subr.mxu0 0.0
        %1210 = vmatpush1.xpose.msra.mxu0 0.0
        %1211 = vmatprep.subr.mxu0 0.0
        %1212 = vmatpush1.xpose.msra.mxu0 0.0
        %1213 = vmatprep.subr.mxu0 0.0
        %1214 = vmatpush1.xpose.msra.mxu0 0.0
        %1215 = vmatprep.subr.mxu0 0.0
        %1216 = vmatpush1.xpose.msra.mxu0 0.0
        %1217 = vmatprep.subr.mxu0 0.0
        %1218 = vmatpush1.xpose.msra.mxu0 0.0
        %1219 = vmatprep.subr.mxu0 0.0
        %1220 = vmatpush1.xpose.msra.mxu0 0.0
        %1221 = vmatprep.subr.mxu0 0.0
        %1222 = vmatpush1.xpose.msra.mxu0 0.0
        %1223 = vmatprep.subr.mxu0 0.0
        %1224 = vmatpush1.xpose.msra.mxu0 0.0
        %1225 = vmatprep.subr.mxu0 0.0
        %1226 = vmatpush1.xpose.msra.mxu0 0.0
        %1227 = vmatprep.subr.mxu0 0.0
        %1228 = vmatpush1.xpose.msra.mxu0 0.0
        %1229 = vmatprep.subr.mxu0 0.0
        %1230 = vmatpush1.xpose.msra.mxu0 0.0
        %1231 = vmatprep.subr.mxu0 0.0
        %1232 = vmatpush1.xpose.msra.mxu0 0.0
        %1233 = vmatprep.subr.mxu0 0.0
        %1234 = vmatpush1.xpose.msra.mxu0 0.0
        %1235 = vmatprep.subr.mxu0 0.0
        %1236 = vmatpush1.xpose.msra.mxu0 0.0
        %1237 = vmatprep.subr.mxu0 0.0
        %1238 = vmatpush1.xpose.msra.mxu0 0.0
        %1239 = vmatprep.subr.mxu0 0.0
        %1240 = vmatpush1.xpose.msra.mxu0 0.0
        %1241 = vmatprep.subr.mxu0 0.0
        %1242 = vmatpush1.xpose.msra.mxu0 0.0
        %1243 = vmatprep.subr.mxu0 0.0
        %1244 = vmatpush1.xpose.msra.mxu0 0.0
        %1245 = vmatprep.subr.mxu0 0.0
        %1246 = vmatpush1.xpose.msra.mxu0 0.0
        %1247 = vmatprep.subr.mxu0 0.0
        %1248 = vmatpush1.xpose.msra.mxu0 0.0
        %1249 = vmatprep.subr.mxu0 0.0
        %1250 = vmatpush1.xpose.msra.mxu0 0.0
        %1251 = vmatprep.subr.mxu0 0.0
        %1252 = vmatpush1.xpose.msra.mxu0 0.0
        %1253 = vmatprep.subr.mxu0 0.0
        %1254 = vmatpush1.xpose.msra.mxu0 0.0
        %1255 = vmatprep.subr.mxu0 0.0
        %1256 = vmatpush1.xpose.msra.mxu0 0.0
        %1257 = vmatprep.subr.mxu0 0.0
        %1258 = vmatpush1.xpose.msra.mxu0 0.0
        %1259 = vmatprep.subr.mxu0 0.0
        %1260 = vmatpush1.xpose.msra.mxu0 0.0
        %1261 = vmatprep.subr.mxu0 0.0
        %1262 = vmatpush1.xpose.msra.mxu0 0.0
        %1263 = vmatprep.mubr.f32.mxu0 0.0
        %1264 = vmatmul.mubr.f32.gmra.mrb[0].mxu0 %v1195
        %v1265 = vpop.f32.mrb[0].mxu0
        %v1266 = vadd.f32 0.0, %v1265
        %v1267 = vpop.f32.mrb[0].mxu0
        %1268 = vdwg.mxu0
        %v1269 = vsel %vm686, %v1266, -inf
        %1270 = vmax.xlane.f32.xlu0 %v1269
        %v1271 = vpop.xlane.xlu0 %1270
        %v1272 = vsub.f32 %v1266, %v1271
        %v1273 = vmul.f32 %v1272, 1.442695
        %v1274 = vpow.pop %v1273
        %v1275 = vsel %vm686, %v1274, 0.0
        %1276 = vadd.xlane.f32.xlu0 %v1275
        %v1277 = vpop.xlane.xlu0 %1276
        %v1278 = vrcp.pop %v1277
        %v1279 = vmul.f32 %v1274, %v1278
        %1280 = vrot.lane.b32.xlu0 %v683, 104
        %v1281 = vpop.permute.xlu0 %1280
        %v1284 = vsel %vm686, %v1279, 0
        %1286 = vmatprep.subr.mxu0 0.0
        %1287 = vmatpush1.msra.mxu0 %v1281
        %1288 = vmatprep.subr.mxu0 0.0
        %1289 = vmatpush1.msra.mxu0 0.0
        %1290 = vmatprep.subr.mxu0 0.0
        %1291 = vmatpush1.msra.mxu0 0.0
        %1292 = vmatprep.subr.mxu0 0.0
        %1293 = vmatpush1.msra.mxu0 0.0
        %1294 = vmatprep.subr.mxu0 0.0
        %1295 = vmatpush1.msra.mxu0 0.0
        %1296 = vmatprep.subr.mxu0 0.0
        %1297 = vmatpush1.msra.mxu0 0.0
        %1298 = vmatprep.subr.mxu0 0.0
        %1299 = vmatpush1.msra.mxu0 0.0
        %1300 = vmatprep.subr.mxu0 0.0
        %1301 = vmatpush1.msra.mxu0 0.0
        %1302 = vmatprep.subr.mxu0 0.0
        %1303 = vmatpush1.msra.mxu0 0.0
        %1304 = vmatprep.subr.mxu0 0.0
        %1305 = vmatpush1.msra.mxu0 0.0
        %1306 = vmatprep.subr.mxu0 0.0
        %1307 = vmatpush1.msra.mxu0 0.0
        %1308 = vmatprep.subr.mxu0 0.0
        %1309 = vmatpush1.msra.mxu0 0.0
        %1310 = vmatprep.subr.mxu0 0.0
        %1311 = vmatpush1.msra.mxu0 0.0
        %1312 = vmatprep.subr.mxu0 0.0
        %1313 = vmatpush1.msra.mxu0 0.0
        %1314 = vmatprep.subr.mxu0 0.0
        %1315 = vmatpush1.msra.mxu0 0.0
        %1316 = vmatprep.subr.mxu0 0.0
        %1317 = vmatpush1.msra.mxu0 0.0
        %1318 = vmatprep.subr.mxu0 0.0
        %1319 = vmatpush1.msra.mxu0 0.0
        %1320 = vmatprep.subr.mxu0 0.0
        %1321 = vmatpush1.msra.mxu0 0.0
        %1322 = vmatprep.subr.mxu0 0.0
        %1323 = vmatpush1.msra.mxu0 0.0
        %1324 = vmatprep.subr.mxu0 0.0
        %1325 = vmatpush1.msra.mxu0 0.0
        %1326 = vmatprep.subr.mxu0 0.0
        %1327 = vmatpush1.msra.mxu0 0.0
        %1328 = vmatprep.subr.mxu0 0.0
        %1329 = vmatpush1.msra.mxu0 0.0
        %1330 = vmatprep.subr.mxu0 0.0
        %1331 = vmatpush1.msra.mxu0 0.0
        %1332 = vmatprep.subr.mxu0 0.0
        %1333 = vmatpush1.msra.mxu0 0.0
        %1334 = vmatprep.subr.mxu0 0.0
        %1335 = vmatpush1.msra.mxu0 0.0
        %1336 = vmatprep.subr.mxu0 0.0
        %1337 = vmatpush1.msra.mxu0 0.0
        %1338 = vmatprep.subr.mxu0 0.0
        %1339 = vmatpush1.msra.mxu0 0.0
        %1340 = vmatprep.subr.mxu0 0.0
        %1341 = vmatpush1.msra.mxu0 0.0
        %1342 = vmatprep.subr.mxu0 0.0
        %1343 = vmatpush1.msra.mxu0 0.0
        %1344 = vmatprep.subr.mxu0 0.0
        %1345 = vmatpush1.msra.mxu0 0.0
        %1346 = vmatprep.subr.mxu0 0.0
        %1347 = vmatpush1.msra.mxu0 0.0
        %1348 = vmatprep.subr.mxu0 0.0
        %1349 = vmatpush1.msra.mxu0 0.0
        %1350 = vmatprep.mubr.f32.mxu0 0.0
        %1351 = vmatmul.mubr.f32.gmra.mrb[0].mxu0 %v1284
        %v1352 = vpop.f32.mrb[0].mxu0
        %v1353 = vadd.f32 0.0, %v1352
        %v1354 = vpop.f32.mrb[0].mxu0
        %1355 = vdwg.mxu0
        %1357 = vrot.lane.b32.xlu0 %v1353, 24
        %v1358 = vpop.permute.xlu0 %1357
        %vm1360 = vcmask 261312
        %1361 = vst.msk [vmem:[#allocation2] sm:$0xff] %vm1360, %v1358
        %v1362 = vld [vmem:[#allocation2] sm:$0xff]
        %v1363 = vld [vmem:[#allocation14] sm:$0xff]
        %v1364 = vld [vmem:[#allocation14 + $0x8] sm:$0xff]
        %v1365 = vld [vmem:[#allocation14 + $0x10] sm:$0xff]
        %v1366 = vld [vmem:[#allocation14 + $0x18] sm:$0xff]
        %v1367 = vld [vmem:[%s7] sm:$0x1]
        %v1369 = vlaneseq
        %v1370 = vshrl.u32 %v1369, 7
        %v1371 = vsub.s32 0, %v1370
        %v1372 = vrot.slane %v1367, %v1371
        %v1375 = vsel %vm457, %v1362, 0
        %1377 = vmatprep.subr.mxu0 0.0
        %1378 = vmatpush1.msra.mxu0 %v1363
        %1379 = vmatprep.subr.mxu0 0.0
        %1380 = vmatpush1.msra.mxu0 %v1364
        %1381 = vmatprep.subr.mxu0 0.0
        %1382 = vmatpush1.msra.mxu0 %v1365
        %1383 = vmatprep.subr.mxu0 0.0
        %1384 = vmatpush1.msra.mxu0 %v1366
        %1385 = vmatprep.subr.mxu0 0.0
        %1386 = vmatpush1.msra.mxu0 0.0
        %1387 = vmatprep.subr.mxu0 0.0
        %1388 = vmatpush1.msra.mxu0 0.0
        %1389 = vmatprep.subr.mxu0 0.0
        %1390 = vmatpush1.msra.mxu0 0.0
        %1391 = vmatprep.subr.mxu0 0.0
        %1392 = vmatpush1.msra.mxu0 0.0
        %1393 = vmatprep.subr.mxu0 0.0
        %1394 = vmatpush1.msra.mxu0 0.0
        %1395 = vmatprep.subr.mxu0 0.0
        %1396 = vmatpush1.msra.mxu0 0.0
        %1397 = vmatprep.subr.mxu0 0.0
        %1398 = vmatpush1.msra.mxu0 0.0
        %1399 = vmatprep.subr.mxu0 0.0
        %1400 = vmatpush1.msra.mxu0 0.0
        %1401 = vmatprep.subr.mxu0 0.0
        %1402 = vmatpush1.msra.mxu0 0.0
        %1403 = vmatprep.subr.mxu0 0.0
        %1404 = vmatpush1.msra.mxu0 0.0
        %1405 = vmatprep.subr.mxu0 0.0
        %1406 = vmatpush1.msra.mxu0 0.0
        %1407 = vmatprep.subr.mxu0 0.0
        %1408 = vmatpush1.msra.mxu0 0.0
        %1409 = vmatprep.subr.mxu0 0.0
        %1410 = vmatpush1.msra.mxu0 0.0
        %1411 = vmatprep.subr.mxu0 0.0
        %1412 = vmatpush1.msra.mxu0 0.0
        %1413 = vmatprep.subr.mxu0 0.0
        %1414 = vmatpush1.msra.mxu0 0.0
        %1415 = vmatprep.subr.mxu0 0.0
        %1416 = vmatpush1.msra.mxu0 0.0
        %1417 = vmatprep.subr.mxu0 0.0
        %1418 = vmatpush1.msra.mxu0 0.0
        %1419 = vmatprep.subr.mxu0 0.0
        %1420 = vmatpush1.msra.mxu0 0.0
        %1421 = vmatprep.subr.mxu0 0.0
        %1422 = vmatpush1.msra.mxu0 0.0
        %1423 = vmatprep.subr.mxu0 0.0
        %1424 = vmatpush1.msra.mxu0 0.0
        %1425 = vmatprep.subr.mxu0 0.0
        %1426 = vmatpush1.msra.mxu0 0.0
        %1427 = vmatprep.subr.mxu0 0.0
        %1428 = vmatpush1.msra.mxu0 0.0
        %1429 = vmatprep.subr.mxu0 0.0
        %1430 = vmatpush1.msra.mxu0 0.0
        %1431 = vmatprep.subr.mxu0 0.0
        %1432 = vmatpush1.msra.mxu0 0.0
        %1433 = vmatprep.subr.mxu0 0.0
        %1434 = vmatpush1.msra.mxu0 0.0
        %1435 = vmatprep.subr.mxu0 0.0
        %1436 = vmatpush1.msra.mxu0 0.0
        %1437 = vmatprep.subr.mxu0 0.0
        %1438 = vmatpush1.msra.mxu0 0.0
        %1439 = vmatprep.subr.mxu0 0.0
        %1440 = vmatpush1.msra.mxu0 0.0
        %1441 = vmatprep.mubr.f32.mxu0 0.0
        %1442 = vmatmul.mubr.f32.gmra.mrb[0].mxu0 %v1375
        %v1443 = vpop.f32.mrb[0].mxu0
        %v1444 = vadd.f32 %v1372, %v1443
        %v1445 = vpop.f32.mrb[0].mxu0
        %1446 = vdwg.mxu0
        %1447 = vst.msk [vmem:[%s449] sm:$0xff] %vm457, %v1444
        %s1448 = sand.u32 %s221, 1
        %s1449 = scalar_lea.sflag [#allocation5], %s1448
        %s1450 = sand.u32 %s221, 1
        %s1451 = smul.addr %s1450, 8
        %s1452 = scalar_lea.vmem [#allocation15], %s1451
        // Predicated region
        $region81: #{tpu_custom_call.1} parent=51 // pred_check
          %p1453 = pneg %p231
        $region82: #{tpu_custom_call.1} parent=51 // pred_check_branch
          %1455 = sbr.rel (%p1453) target = $region84
        $region83: #{tpu_custom_call.1} parent=51 // pred_region
          %s1457 = ssub.s32 128, 128
          %1458 = vsyncadd %s1449, %s1457
          %s1459 = smul.addr %s30, 128
          %s1460 = scalar_lea.hbm %s8, %s1459
          %s1462 = sshll.u32 %s1452, 4
          %s1463 = int_to_ptr.vmem [resolvable:$true] %s1462
          %1465 = dma.vmem_to_hbm [thread:$0]  %s1463, 128, %s1460, %s1449
        $region84: #{tpu_custom_call.1} parent=51 // pred_fallthru
          _
      $region52: #{tpu_custom_call.1} parent=5 // pred_fallthru
        _
      %p1466 = scmp.le.s32.totalorder 2, %s25
      // Predicated region
      $region85: #{tpu_custom_call.1} parent=5 // pred_check
        %p1467 = pneg %p1466
      $region86: #{tpu_custom_call.1} parent=5 // pred_check_branch
        %1469 = sbr.rel (%p1467) target = $region88
      $region87: #{tpu_custom_call.1} parent=5 // pred_region
        %s1470 = ssub.s32 %s25, 2
        // Predicated region
        $region89: #{tpu_custom_call.1} parent=87 // pred_check
          %p1471 = pneg %p237
        $region90: #{tpu_custom_call.1} parent=87 // pred_check_branch
          %1473 = sbr.rel (%p1471) target = $region92
        $region91: #{tpu_custom_call.1} parent=87 // pred_region
          %s1474 = sand.u32 %s222, 1
          %s1475 = scalar_lea.sflag [#allocation5], %s1474
          %s1476 = sand.u32 %s222, 1
          %s1477 = smul.addr %s1476, 8
          %s1478 = scalar_lea.vmem [#allocation15], %s1477
          %1479 = dma.done %s1475, 128
        $region92: #{tpu_custom_call.1} parent=87 // pred_fallthru
          _
      $region88: #{tpu_custom_call.1} parent=5 // pred_fallthru
        _
    $region6: #{tpu_custom_call.1} parent=1 // loop_footer
      %s29 = sadd.s32 1, %s25
    $region7: #{tpu_custom_call.1} parent=1 // loop_footer_branch
      %24 = sbr.rel target = $region3
    $region8: #{tpu_custom_call.1} parent=1 // loop_exit
      _
    %1480 = vsyncpa [#allocation4], 1
    %s1481 = scalar_lea.sflag [#allocation4], 1
    %1482 = vsyncpa %s1481, 1
    %1483 = vsyncpa [#allocation7], 1
    %s1484 = scalar_lea.sflag [#allocation7], 1
    %1485 = vsyncpa %s1484, 1
    %1486 = vsyncpa [#allocation10], 1
    %1487 = vsyncpa [#allocation13], 1
    %1488 = vsyncpa [#allocation5], 1
    %s1489 = scalar_lea.sflag [#allocation5], 1
    %1490 = vsyncpa %s1489, 1

</llo_original>
